<compile_context>
chip_gen: v6e
topology: v6e:2x2x1
jax: 0.10.0
libtpu: 0.0.40
codegen_flags: <defaults>
</compile_context>

<pallas_src>
import math
import functools

import jax
import jax.numpy as jnp
from jax import lax
from jax.experimental import pallas as pl
from jax.experimental.pallas import tpu as pltpu


def _split_heads(m, n_heads, head_dim):
    """(R, C) -> (H, R, D) via static lane slices (done at matmul time, not in the cache)."""
    return jnp.stack(
        [m[:, h * head_dim:(h + 1) * head_dim] for h in range(n_heads)], axis=0)


def _attn_chunk(carry, q, k_c, v_c, causal_mask):
    """One online-softmax update with an (H, TK, D) KV chunk.

    `causal_mask` is None for fully-visible chunks, so those chunks carry no iota /
    compare / select work (review: v5e VALU)."""
    m, l, acc = carry
    s = jnp.einsum('hqd,hkd->hqk', q, k_c,
                   preferred_element_type=jnp.float32)              # (H, TQ, TK) f32
    if causal_mask is not None:
        s = jnp.where(causal_mask[None], s, jnp.float32(-1e30))
    m_new = jnp.maximum(m, jnp.max(s, axis=-1, keepdims=True))
    alpha = jnp.exp(m - m_new)
    # NOTE(v6e/v7x): this exp over (H, TQ, TK) is the likely EUP bottleneck there; bf16 exp
    # would double its rate but costs accuracy, so it stays f32.
    p = jnp.exp(s - m_new)
    l_new = alpha * l + jnp.sum(p, axis=-1, keepdims=True)
    acc_new = alpha * acc + jnp.einsum('hqk,hkd->hqd', p.astype(jnp.bfloat16), v_c,
                                       preferred_element_type=jnp.float32)
    return m_new, l_new, acc_new


def _block_kernel(n_heads,
                  x_ref, wqkv_ref, bqkv_ref, wp_ref, w1_ref, b1_ref, w2_ref, vec_ref,
                  o_ref,
                  k_scr, v_scr, att_scr):
    qi = pl.program_id(1)
    x = x_ref[0]                                     # (TQ, C) f32 query-row tile
    TQ, C = x.shape
    H = n_heads
    D = C // H
    inv_sqrt_d = 1.0 / math.sqrt(D)
    row0 = pl.multiple_of(qi * TQ, TQ)               # first sequence position of this tile

    # ---- fused QKV projection (bf16 MXU operands, f32 accumulation) ----------------------
    qkv = jnp.dot(x.astype(jnp.bfloat16), wqkv_ref[...],
                  preferred_element_type=jnp.float32) + bqkv_ref[...]       # (TQ, 3C) f32

    # Extend the per-batch K/V cache ((T, C) layout, lane dim = C) with this tile's rows.
    # Each row is projected exactly once; the 1/sqrt(D) scale is folded into K.
    k_scr[pl.ds(row0, TQ), :] = (qkv[:, C:2 * C] * inv_sqrt_d).astype(jnp.bfloat16)
    v_scr[pl.ds(row0, TQ), :] = qkv[:, 2 * C:3 * C].astype(jnp.bfloat16)

    q_all = _split_heads(qkv[:, :C].astype(jnp.bfloat16), H, D)             # (H, TQ, D)

    # ---- causal flash attention over KV chunks of size TQ --------------------------------
    neg = jnp.float32(-1e30)
    carry0 = (jnp.full((H, TQ, 1), neg, jnp.float32),
              jnp.zeros((H, TQ, 1), jnp.float32),
              jnp.zeros((H, TQ, D), jnp.float32))

    def kv_step(kv, carry):                          # fully-visible chunks: no mask work
        c0 = pl.multiple_of(kv * TQ, TQ)
        k_c = _split_heads(k_scr[pl.ds(c0, TQ), :], H, D)
        v_c = _split_heads(v_scr[pl.ds(c0, TQ), :], H, D)
        return _attn_chunk(carry, q_all, k_c, v_c, None)

    carry = lax.fori_loop(0, qi, kv_step, carry0)

    # Diagonal chunk (keys = this tile's own rows): the only chunk needing the causal mask.
    causal = (lax.broadcasted_iota(jnp.int32, (TQ, TQ), 0) >=
              lax.broadcasted_iota(jnp.int32, (TQ, TQ), 1))
    k_d = _split_heads(k_scr[pl.ds(row0, TQ), :], H, D)
    v_d = _split_heads(v_scr[pl.ds(row0, TQ), :], H, D)
    _, l_fin, acc = _attn_chunk(carry, q_all, k_d, v_d, causal)

    att = acc * pl.reciprocal(l_fin, approx=True)    # (H, TQ, D) f32, EUP reciprocal

    # packed per-channel vectors: rows = [bp, b2, g1, be1, g2, be2, 0, 0]
    bp = vec_ref[0:1, :]; b2 = vec_ref[1:2, :]
    g1 = vec_ref[2:3, :]; be1 = vec_ref[3:4, :]
    g2 = vec_ref[4:5, :]; be2 = vec_ref[5:6, :]

    # ---- output projection: merge heads into (TQ, C), then ONE full-C-contraction matmul --
    for h in range(H):                               # static, small: H narrow stores per tile
        att_scr[:, h * D:(h + 1) * D] = att[h].astype(jnp.bfloat16)
    att_out = jnp.dot(att_scr[...], wp_ref[...],
                      preferred_element_type=jnp.float32) + bp              # (TQ, C) f32

    # ---- residual + LayerNorm 1 (f32 vector math) -----------------------------------------
    x1 = x + att_out
    mu1 = jnp.mean(x1, axis=-1, keepdims=True)
    var1 = jnp.mean(jnp.square(x1 - mu1), axis=-1, keepdims=True)
    x1n = (x1 - mu1) * lax.rsqrt(var1 + 1e-5) * g1 + be1

    # ---- MLP: Linear -> GELU (tanh approx, EUP) -> Linear ---------------------------------
    h1 = jnp.dot(x1n.astype(jnp.bfloat16), w1_ref[...],
                 preferred_element_type=jnp.float32) + b1_ref[...]
    # TODO(synk): torch nn.GELU() defaults to the exact erf form; the tanh approximation
    # (max abs deviation ~3e-4) is used so the activation runs on the EUP tanh slot instead
    # of a VPU erf polynomial between the two MLP matmuls.
    h1 = jax.nn.gelu(h1, approximate=True)
    mlp = jnp.dot(h1.astype(jnp.bfloat16), w2_ref[...],
                  preferred_element_type=jnp.float32) + b2

    # ---- residual + LayerNorm 2 -------------------------------------------------------------
    x2 = x1n + mlp
    mu2 = jnp.mean(x2, axis=-1, keepdims=True)
    var2 = jnp.mean(jnp.square(x2 - mu2), axis=-1, keepdims=True)
    out = (x2 - mu2) * lax.rsqrt(var2 + 1e-5) * g2 + be2
    o_ref[0] = out.astype(o_ref.dtype)


def _vmem_limit_bytes():
    """Per-generation VMEM budget (v5e/v6e: 128 MiB physical, v7x: 64 MiB)."""
    try:
        cap = int(pltpu.get_tpu_info().vmem_capacity_bytes)
        return max(32 << 20, min(cap - (16 << 20), 112 << 20))
    except Exception:
        return 56 << 20        # conservative default: fits under v7x's 64 MiB physical VMEM


def _default_seq_tile():
    """TQ default: 256 fills the 256-wide v6e/v7x MXU; v5e's 128-wide MXU gains nothing past 128."""
    try:
        chip = str(getattr(pltpu.get_tpu_info(), "chip_version", "")).lower()
        if "5" in chip:
            return 128
    except Exception:
        pass
    return 256


def _make_block_call(B, T, C, Ch, H, TQ, out_dtype):
    NQ = T // TQ

    # Weights / biases: whole-array, VMEM-resident for the entire kernel (single copy,
    # no per-step DMA, no double buffering).
    def vmem_full():
        return pl.BlockSpec(memory_space=pltpu.MemorySpace.VMEM)

    in_specs = [
        pl.BlockSpec((1, TQ, C), lambda b, qi: (b, qi, 0)),   # x tile (f32)
        vmem_full(),                                          # fused Wqkv  (C, 3C) bf16
        vmem_full(),                                          # fused bqkv  (1, 3C) f32
        vmem_full(),                                          # Wp          (C, C)  bf16
        vmem_full(),                                          # W1          (C, Ch) bf16
        vmem_full(),                                          # b1          (1, Ch) f32
        vmem_full(),                                          # W2          (Ch, C) bf16
        vmem_full(),                                          # packed per-channel vectors (8, C) f32
    ]

    # Causal attention ~= half of the dense 4*B*T*T*C; transcendentals ~= exp count + GELU tanh.
    cost = pl.CostEstimate(
        flops=int(2 * B * T * C * (4 * C + 2 * Ch) + 2 * B * T * T * C),
        transcendentals=int(B * H * T * T // 2 + B * T * Ch),
        bytes_accessed=int(2 * B * T * C * 4 + (4 * C * C + 2 * C * Ch) * 2
                           + (3 * C + Ch + 8 * C) * 4),
    )

    return pl.pallas_call(
        functools.partial(_block_kernel, H),
        out_shape=jax.ShapeDtypeStruct((B, T, C), out_dtype),
        grid_spec=pltpu.PrefetchScalarGridSpec(
            num_scalar_prefetch=0,
            grid=(B, NQ),
            in_specs=in_specs,
            out_specs=pl.BlockSpec((1, TQ, C), lambda b, qi: (b, qi, 0)),
            scratch_shapes=[
                pltpu.VMEM((T, C), jnp.bfloat16),    # K cache (scale folded in), (T, C) layout
                pltpu.VMEM((T, C), jnp.bfloat16),    # V cache
                pltpu.VMEM((TQ, C), jnp.bfloat16),   # head-merged attention out for the proj matmul
            ],
        ),
        compiler_params=pltpu.CompilerParams(
            # Batch axis may shard across cores; the seq-tile axis MUST stay sequential
            # ("arbitrary", never "parallel"): the K/V scratch is filled incrementally along it.
            dimension_semantics=("parallel", "arbitrary"),
            vmem_limit_bytes=_vmem_limit_bytes(),
        ),
        cost_estimate=cost,
    )


def block_forward(x, params, n_heads, seq_tile=None):
    B, T, C = x.shape
    H = n_heads
    assert C % H == 0
    if seq_tile is None:
        seq_tile = _default_seq_tile()
    TQ = min(seq_tile, T)
    assert T % TQ == 0 and (TQ == T or TQ % 16 == 0), \
        "seq tile must divide T and be a multiple of 16 (bf16 sublane packing)"
    Ch = params["w1"].shape[1]
    bf16 = jnp.bfloat16

    # Host-side layout plumbing only (no extra in-kernel work): fuse QKV, bf16 matmul weights,
    # pack the six per-channel vectors into one (8, C) array.
    wqkv = jnp.concatenate([params["wq"], params["wk"], params["wv"]], axis=1).astype(bf16)
    bqkv = jnp.concatenate([params["bq"], params["bk"], params["bv"]], axis=1).astype(jnp.float32)
    wp = params["wp"].astype(bf16)                   # kept (C, C): full-C-contraction projection
    w1 = params["w1"].astype(bf16)
    b1 = params["b1"].astype(jnp.float32)
    w2 = params["w2"].astype(bf16)
    vecs = jnp.concatenate(
        [params["bp"], params["b2"], params["g1"], params["be1"],
         params["g2"], params["be2"], jnp.zeros((2, C), jnp.float32)], axis=0)

    call = _make_block_call(B, T, C, Ch, H, TQ, x.dtype)
    return call(x, wqkv, bqkv, wp, w1, b1, w2, vecs)


def reference_forward(x, p, n_heads):
    """Pure-JAX f32 reference mirroring the PyTorch Block (dropout = identity, exact-erf GELU)."""
    B, T, C = x.shape
    D = C // n_heads

    def linear(v, w, b):
        return v @ w + b

    q = linear(x, p["wq"], p["bq"]).reshape(B, T, n_heads, D).transpose(0, 2, 1, 3)
    k = linear(x, p["wk"], p["bk"]).reshape(B, T, n_heads, D).transpose(0, 2, 1, 3)
    v = linear(x, p["wv"], p["bv"]).reshape(B, T, n_heads, D).transpose(0, 2, 1, 3)
    w = jnp.einsum("bhqd,bhkd->bhqk", q, k) / math.sqrt(D)
    mask = jnp.tril(jnp.ones((T, T), bool))
    w = jnp.where(mask, w, -jnp.inf)
    w = jax.nn.softmax(w, axis=-1)
    att = jnp.einsum("bhqk,bhkd->bhqd", w, v).transpose(0, 2, 1, 3).reshape(B, T, C)
    att = linear(att, p["wp"], p["bp"])

    def ln(v, g, b):
        mu = jnp.mean(v, -1, keepdims=True)
        var = jnp.mean((v - mu) ** 2, -1, keepdims=True)
        return (v - mu) * lax.rsqrt(var + 1e-5) * g + b

    x1 = ln(x + att, p["g1"], p["be1"])
    h = linear(x1, p["w1"], p["b1"])
    h = 0.5 * h * (1.0 + lax.erf(h / math.sqrt(2.0)))
    m = linear(h, p["w2"], p["b2"])
    return ln(x1 + m, p["g2"], p["be2"])


if __name__ == "__main__":
    B, T, C = 2, 32, 32            # small shapes; T split into 2 query tiles of 16
    n_heads = 2
    widening_factor = 4
    Ch = widening_factor * C

    key = jax.random.PRNGKey(0)
    ks = jax.random.split(key, 16)
    scale = 0.02
    params = {
        "wq": jax.random.normal(ks[0], (C, C), jnp.float32) * scale,
        "bq": jax.random.normal(ks[1], (1, C), jnp.float32) * scale,
        "wk": jax.random.normal(ks[2], (C, C), jnp.float32) * scale,
        "bk": jax.random.normal(ks[3], (1, C), jnp.float32) * scale,
        "wv": jax.random.normal(ks[4], (C, C), jnp.float32) * scale,
        "bv": jax.random.normal(ks[5], (1, C), jnp.float32) * scale,
        "wp": jax.random.normal(ks[6], (C, C), jnp.float32) * scale,
        "bp": jax.random.normal(ks[7], (1, C), jnp.float32) * scale,
        "g1": jnp.ones((1, C), jnp.float32),
        "be1": jnp.zeros((1, C), jnp.float32),
        "w1": jax.random.normal(ks[8], (C, Ch), jnp.float32) * scale,
        "b1": jax.random.normal(ks[9], (1, Ch), jnp.float32) * scale,
        "w2": jax.random.normal(ks[10], (Ch, C), jnp.float32) * scale,
        "b2": jax.random.normal(ks[11], (1, C), jnp.float32) * scale,
        "g2": jnp.ones((1, C), jnp.float32),
        "be2": jnp.zeros((1, C), jnp.float32),
    }

    x = jax.random.normal(ks[12], (B, T, C), jnp.float32)

    out = block_forward(x, params, n_heads, seq_tile=16)
    out = jax.block_until_ready(out)

    ref = reference_forward(x, params, n_heads)
    assert out.shape == (B, T, C)
    max_err = float(jnp.max(jnp.abs(out - ref)))
    # bf16 matmuls + approx reciprocal + tanh GELU vs exact-f32 reference -> relaxed tolerance.
    assert jnp.allclose(out, ref, atol=3e-2, rtol=3e-2), \
        f"mismatch vs reference (max abs err {max_err})"

    print("KERNEL_OK")
</pallas_src>

<mosaic_0001>
module attributes {stable_mosaic.version = 11 : i64} {
  func.func @_block_kernel(%arg0: i32, %arg1: i32, %arg2: memref<1x16x32xf32, #tpu.memory_space<vmem>>, %arg3: memref<32x96xbf16, #tpu.memory_space<vmem>>, %arg4: memref<1x96xf32, #tpu.memory_space<vmem>>, %arg5: memref<32x32xbf16, #tpu.memory_space<vmem>>, %arg6: memref<32x128xbf16, #tpu.memory_space<vmem>>, %arg7: memref<1x128xf32, #tpu.memory_space<vmem>>, %arg8: memref<128x32xbf16, #tpu.memory_space<vmem>>, %arg9: memref<8x32xf32, #tpu.memory_space<vmem>>, %arg10: memref<1x16x32xf32, #tpu.memory_space<vmem>>, %arg11: memref<32x32xbf16, #tpu.memory_space<vmem>>, %arg12: memref<32x32xbf16, #tpu.memory_space<vmem>>, %arg13: memref<16x32xbf16, #tpu.memory_space<vmem>>) attributes {dimension_semantics = [#tpu.dimension_semantics<parallel>, #tpu.dimension_semantics<arbitrary>], iteration_bounds = array<i64: 2, 2>, scalar_prefetch = 0 : i64, scratch_operands = 3 : i64, tpu.core_type = #tpu.core_type<tc>, window_params = [{transform_indices = @transform_0, window_bounds = array<i64: 1, 16, 32>}, {pipeline_mode = #tpu.pipeline_mode<synchronous>, transform_indices = @transform_1, window_bounds = array<i64: 32, 96>}, {pipeline_mode = #tpu.pipeline_mode<synchronous>, transform_indices = @transform_2, window_bounds = array<i64: 1, 96>}, {pipeline_mode = #tpu.pipeline_mode<synchronous>, transform_indices = @transform_3, window_bounds = array<i64: 32, 32>}, {pipeline_mode = #tpu.pipeline_mode<synchronous>, transform_indices = @transform_4, window_bounds = array<i64: 32, 128>}, {pipeline_mode = #tpu.pipeline_mode<synchronous>, transform_indices = @transform_5, window_bounds = array<i64: 1, 128>}, {pipeline_mode = #tpu.pipeline_mode<synchronous>, transform_indices = @transform_6, window_bounds = array<i64: 128, 32>}, {pipeline_mode = #tpu.pipeline_mode<synchronous>, transform_indices = @transform_7, window_bounds = array<i64: 8, 32>}, {transform_indices = @transform_8, window_bounds = array<i64: 1, 16, 32>}]} {
    %c0 = arith.constant 0 : index
    %c0_0 = arith.constant 0 : index
    %c0_1 = arith.constant 0 : index
    %0 = vector.load %arg2[%c0, %c0_0, %c0_1] : memref<1x16x32xf32, #tpu.memory_space<vmem>>, vector<1x16x32xf32>
    %1 = vector.shape_cast %0 : vector<1x16x32xf32> to vector<16x32xf32>
    %c16_i32 = arith.constant 16 : i32
    %2 = arith.muli %arg1, %c16_i32 : i32
    %3 = tpu.assume_multiple %2, 16 : i32
    %4 = arith.truncf %1 : vector<16x32xf32> to vector<16x32xbf16>
    %c0_2 = arith.constant 0 : index
    %c0_3 = arith.constant 0 : index
    %5 = vector.load %arg3[%c0_2, %c0_3] : memref<32x96xbf16, #tpu.memory_space<vmem>>, vector<32x96xbf16>
    %cst = arith.constant dense<0.000000e+00> : vector<16x96xf32>
    %6 = tpu.matmul %4, %5, %cst {dimension_numbers = #tpu.dot_dimension_numbers<[1], [0], [0], [1], [0, 0, 1, 1], [], []>} : vector<16x32xbf16>, vector<32x96xbf16>, vector<16x96xf32> -> vector<16x96xf32>
    %c0_4 = arith.constant 0 : index
    %c0_5 = arith.constant 0 : index
    %7 = vector.load %arg4[%c0_4, %c0_5] : memref<1x96xf32, #tpu.memory_space<vmem>>, vector<1x96xf32>
    %8 = vector.broadcast %7 : vector<1x96xf32> to vector<16x96xf32>
    %9 = arith.addf %6, %8 : vector<16x96xf32>
    %10 = vector.extract_strided_slice %9 {offsets = [0, 32], sizes = [16, 32], strides = [1, 1]} : vector<16x96xf32> to vector<16x32xf32>
    %cst_6 = arith.constant 2.500000e-01 : f32
    %11 = vector.broadcast %cst_6 : f32 to vector<16x32xf32>
    %12 = arith.mulf %10, %11 : vector<16x32xf32>
    %13 = arith.truncf %12 : vector<16x32xf32> to vector<16x32xbf16>
    %14 = arith.index_cast %3 : i32 to index
    %c0_7 = arith.constant 0 : index
    %15 = vector.load %arg11[%14, %c0_7] : memref<32x32xbf16, #tpu.memory_space<vmem>>, vector<16x32xbf16>
    tpu.vector_store %arg11[%14, %c0_7], %13 {strides = array<i32>} : memref<32x32xbf16, #tpu.memory_space<vmem>>, vector<16x32xbf16>,
    %16 = vector.extract_strided_slice %9 {offsets = [0, 64], sizes = [16, 32], strides = [1, 1]} : vector<16x96xf32> to vector<16x32xf32>
    %17 = arith.truncf %16 : vector<16x32xf32> to vector<16x32xbf16>
    %18 = arith.index_cast %3 : i32 to index
    %c0_8 = arith.constant 0 : index
    %19 = vector.load %arg12[%18, %c0_8] : memref<32x32xbf16, #tpu.memory_space<vmem>>, vector<16x32xbf16>
    tpu.vector_store %arg12[%18, %c0_8], %17 {strides = array<i32>} : memref<32x32xbf16, #tpu.memory_space<vmem>>, vector<16x32xbf16>,
    %20 = vector.extract_strided_slice %9 {offsets = [0, 0], sizes = [16, 32], strides = [1, 1]} : vector<16x96xf32> to vector<16x32xf32>
    %21 = arith.truncf %20 : vector<16x32xf32> to vector<16x32xbf16>
    %22 = vector.extract_strided_slice %21 {offsets = [0, 0], sizes = [16, 16], strides = [1, 1]} : vector<16x32xbf16> to vector<16x16xbf16>
    %23 = vector.extract_strided_slice %21 {offsets = [0, 16], sizes = [16, 16], strides = [1, 1]} : vector<16x32xbf16> to vector<16x16xbf16>
    %24 = vector.shape_cast %22 : vector<16x16xbf16> to vector<1x16x16xbf16>
    %25 = vector.shape_cast %23 : vector<16x16xbf16> to vector<1x16x16xbf16>
    %26 = tpu.concatenate %24, %25 in 0 : vector<1x16x16xbf16>, vector<1x16x16xbf16> -> vector<2x16x16xbf16>
    %cst_9 = arith.constant -1.000000e+30 : f32
    %27 = vector.broadcast %cst_9 : f32 to vector<2x16x1xf32>
    %cst_10 = arith.constant 0.000000e+00 : f32
    %28 = vector.broadcast %cst_10 : f32 to vector<2x16x1xf32>
    %cst_11 = arith.constant 0.000000e+00 : f32
    %29 = vector.broadcast %cst_11 : f32 to vector<2x16x16xf32>
    %c0_i32 = arith.constant 0 : i32
    %30 = arith.subi %arg1, %c0_i32 : i32
    %31 = arith.addi %c0_i32, %30 : i32
    %c1_i32 = arith.constant 1 : i32
    %32:3 = scf.for %arg14 = %c0_i32 to %31 step %c1_i32 iter_args(%arg15 = %27, %arg16 = %28, %arg17 = %29) -> (vector<2x16x1xf32>, vector<2x16x1xf32>, vector<2x16x16xf32>)  : i32 {
      %c16_i32_59 = arith.constant 16 : i32
      %168 = arith.muli %arg14, %c16_i32_59 : i32
      %169 = tpu.assume_multiple %168, 16 : i32
      %170 = arith.index_cast %169 : i32 to index
      %c0_60 = arith.constant 0 : index
      %171 = vector.load %arg11[%170, %c0_60] : memref<32x32xbf16, #tpu.memory_space<vmem>>, vector<16x32xbf16>
      %172 = vector.extract_strided_slice %171 {offsets = [0, 0], sizes = [16, 16], strides = [1, 1]} : vector<16x32xbf16> to vector<16x16xbf16>
      %173 = vector.extract_strided_slice %171 {offsets = [0, 16], sizes = [16, 16], strides = [1, 1]} : vector<16x32xbf16> to vector<16x16xbf16>
      %174 = vector.shape_cast %172 : vector<16x16xbf16> to vector<1x16x16xbf16>
      %175 = vector.shape_cast %173 : vector<16x16xbf16> to vector<1x16x16xbf16>
      %176 = tpu.concatenate %174, %175 in 0 : vector<1x16x16xbf16>, vector<1x16x16xbf16> -> vector<2x16x16xbf16>
      %177 = arith.index_cast %169 : i32 to index
      %c0_61 = arith.constant 0 : index
      %178 = vector.load %arg12[%177, %c0_61] : memref<32x32xbf16, #tpu.memory_space<vmem>>, vector<16x32xbf16>
      %179 = vector.extract_strided_slice %178 {offsets = [0, 0], sizes = [16, 16], strides = [1, 1]} : vector<16x32xbf16> to vector<16x16xbf16>
      %180 = vector.extract_strided_slice %178 {offsets = [0, 16], sizes = [16, 16], strides = [1, 1]} : vector<16x32xbf16> to vector<16x16xbf16>
      %181 = vector.shape_cast %179 : vector<16x16xbf16> to vector<1x16x16xbf16>
      %182 = vector.shape_cast %180 : vector<16x16xbf16> to vector<1x16x16xbf16>
      %183 = tpu.concatenate %181, %182 in 0 : vector<1x16x16xbf16>, vector<1x16x16xbf16> -> vector<2x16x16xbf16>
      "tpu.trace_start"() <{level = 10 : i32, message = "hqd,hkd->hqk"}> : () -> ()
      %cst_62 = arith.constant dense<0.000000e+00> : vector<2x16x16xf32>
      %184 = tpu.matmul %26, %176, %cst_62 {dimension_numbers = #tpu.dot_dimension_numbers<[2], [2], [1], [1], [0, 0, 0, 1, 1, 1], [0], [0]>} : vector<2x16x16xbf16>, vector<2x16x16xbf16>, vector<2x16x16xf32> -> vector<2x16x16xf32>
      "tpu.trace_stop"() : () -> ()
      %cst_63 = arith.constant dense<0xFF800000> : vector<2x16xf32>
      %185 = vector.multi_reduction <maximumf>, %184, %cst_63 [2] : vector<2x16x16xf32> to vector<2x16xf32>
      %186 = vector.shape_cast %185 : vector<2x16xf32> to vector<2x16x1xf32>
      %187 = arith.maximumf %arg15, %186 : vector<2x16x1xf32>
      %188 = arith.subf %arg15, %187 : vector<2x16x1xf32>
      %189 = math.exp %188 : vector<2x16x1xf32>
      %190 = vector.broadcast %187 : vector<2x16x1xf32> to vector<2x16x16xf32>
      %191 = arith.subf %184, %190 : vector<2x16x16xf32>
      %192 = math.exp %191 : vector<2x16x16xf32>
      %193 = arith.mulf %189, %arg16 : vector<2x16x1xf32>
      %cst_64 = arith.constant dense<0.000000e+00> : vector<2x16xf32>
      %194 = vector.multi_reduction <add>, %192, %cst_64 [2] : vector<2x16x16xf32> to vector<2x16xf32>
      %195 = vector.shape_cast %194 : vector<2x16xf32> to vector<2x16x1xf32>
      %196 = arith.addf %193, %195 : vector<2x16x1xf32>
      %197 = vector.broadcast %189 : vector<2x16x1xf32> to vector<2x16x16xf32>
      %198 = arith.mulf %197, %arg17 : vector<2x16x16xf32>
      %199 = arith.truncf %192 : vector<2x16x16xf32> to vector<2x16x16xbf16>
      "tpu.trace_start"() <{level = 10 : i32, message = "hqk,hkd->hqd"}> : () -> ()
      %cst_65 = arith.constant dense<0.000000e+00> : vector<2x16x16xf32>
      %200 = tpu.matmul %199, %183, %cst_65 {dimension_numbers = #tpu.dot_dimension_numbers<[2], [1], [1], [2], [0, 0, 0, 1, 1, 2], [0], [0]>} : vector<2x16x16xbf16>, vector<2x16x16xbf16>, vector<2x16x16xf32> -> vector<2x16x16xf32>
      "tpu.trace_stop"() : () -> ()
      %201 = arith.addf %198, %200 : vector<2x16x16xf32>
      scf.yield %187, %196, %201 : vector<2x16x1xf32>, vector<2x16x1xf32>, vector<2x16x16xf32>
    }
    %33 = tpu.iota {dimensions = array<i32: 0>} : vector<16x16xi32>
    %34 = tpu.iota {dimensions = array<i32: 1>} : vector<16x16xi32>
    %35 = arith.cmpi sge, %33, %34 : vector<16x16xi32>
    %36 = arith.index_cast %3 : i32 to index
    %c0_12 = arith.constant 0 : index
    %37 = vector.load %arg11[%36, %c0_12] : memref<32x32xbf16, #tpu.memory_space<vmem>>, vector<16x32xbf16>
    %38 = vector.extract_strided_slice %37 {offsets = [0, 0], sizes = [16, 16], strides = [1, 1]} : vector<16x32xbf16> to vector<16x16xbf16>
    %39 = vector.extract_strided_slice %37 {offsets = [0, 16], sizes = [16, 16], strides = [1, 1]} : vector<16x32xbf16> to vector<16x16xbf16>
    %40 = vector.shape_cast %38 : vector<16x16xbf16> to vector<1x16x16xbf16>
    %41 = vector.shape_cast %39 : vector<16x16xbf16> to vector<1x16x16xbf16>
    %42 = tpu.concatenate %40, %41 in 0 : vector<1x16x16xbf16>, vector<1x16x16xbf16> -> vector<2x16x16xbf16>
    %43 = arith.index_cast %3 : i32 to index
    %c0_13 = arith.constant 0 : index
    %44 = vector.load %arg12[%43, %c0_13] : memref<32x32xbf16, #tpu.memory_space<vmem>>, vector<16x32xbf16>
    %45 = vector.extract_strided_slice %44 {offsets = [0, 0], sizes = [16, 16], strides = [1, 1]} : vector<16x32xbf16> to vector<16x16xbf16>
    %46 = vector.extract_strided_slice %44 {offsets = [0, 16], sizes = [16, 16], strides = [1, 1]} : vector<16x32xbf16> to vector<16x16xbf16>
    %47 = vector.shape_cast %45 : vector<16x16xbf16> to vector<1x16x16xbf16>
    %48 = vector.shape_cast %46 : vector<16x16xbf16> to vector<1x16x16xbf16>
    %49 = tpu.concatenate %47, %48 in 0 : vector<1x16x16xbf16>, vector<1x16x16xbf16> -> vector<2x16x16xbf16>
    "tpu.trace_start"() <{level = 10 : i32, message = "hqd,hkd->hqk"}> : () -> ()
    %cst_14 = arith.constant dense<0.000000e+00> : vector<2x16x16xf32>
    %50 = tpu.matmul %26, %42, %cst_14 {dimension_numbers = #tpu.dot_dimension_numbers<[2], [2], [1], [1], [0, 0, 0, 1, 1, 1], [0], [0]>} : vector<2x16x16xbf16>, vector<2x16x16xbf16>, vector<2x16x16xf32> -> vector<2x16x16xf32>
    "tpu.trace_stop"() : () -> ()
    %51 = vector.shape_cast %35 : vector<16x16xi1> to vector<1x16x16xi1>
    %cst_15 = arith.constant -1.000000e+30 : f32
    %52 = vector.shape_cast %51 : vector<1x16x16xi1> to vector<1x16x16xi1>
    %53 = vector.broadcast %52 : vector<1x16x16xi1> to vector<2x16x16xi1>
    %54 = vector.broadcast %cst_15 : f32 to vector<2x16x16xf32>
    %55 = arith.select %53, %50, %54 : vector<2x16x16xi1>, vector<2x16x16xf32>
    %cst_16 = arith.constant dense<0xFF800000> : vector<2x16xf32>
    %56 = vector.multi_reduction <maximumf>, %55, %cst_16 [2] : vector<2x16x16xf32> to vector<2x16xf32>
    %57 = vector.shape_cast %56 : vector<2x16xf32> to vector<2x16x1xf32>
    %58 = arith.maximumf %32#0, %57 : vector<2x16x1xf32>
    %59 = arith.subf %32#0, %58 : vector<2x16x1xf32>
    %60 = math.exp %59 : vector<2x16x1xf32>
    %61 = vector.broadcast %58 : vector<2x16x1xf32> to vector<2x16x16xf32>
    %62 = arith.subf %55, %61 : vector<2x16x16xf32>
    %63 = math.exp %62 : vector<2x16x16xf32>
    %64 = arith.mulf %60, %32#1 : vector<2x16x1xf32>
    %cst_17 = arith.constant dense<0.000000e+00> : vector<2x16xf32>
    %65 = vector.multi_reduction <add>, %63, %cst_17 [2] : vector<2x16x16xf32> to vector<2x16xf32>
    %66 = vector.shape_cast %65 : vector<2x16xf32> to vector<2x16x1xf32>
    %67 = arith.addf %64, %66 : vector<2x16x1xf32>
    %68 = vector.broadcast %60 : vector<2x16x1xf32> to vector<2x16x16xf32>
    %69 = arith.mulf %68, %32#2 : vector<2x16x16xf32>
    %70 = arith.truncf %63 : vector<2x16x16xf32> to vector<2x16x16xbf16>
    "tpu.trace_start"() <{level = 10 : i32, message = "hqk,hkd->hqd"}> : () -> ()
    %cst_18 = arith.constant dense<0.000000e+00> : vector<2x16x16xf32>
    %71 = tpu.matmul %70, %49, %cst_18 {dimension_numbers = #tpu.dot_dimension_numbers<[2], [1], [1], [2], [0, 0, 0, 1, 1, 2], [0], [0]>} : vector<2x16x16xbf16>, vector<2x16x16xbf16>, vector<2x16x16xf32> -> vector<2x16x16xf32>
    "tpu.trace_stop"() : () -> ()
    %72 = arith.addf %69, %71 : vector<2x16x16xf32>
    %73 = tpu.reciprocal %67 {approx = true} : vector<2x16x1xf32> -> vector<2x16x1xf32>
    %74 = vector.broadcast %73 : vector<2x16x1xf32> to vector<2x16x16xf32>
    %75 = arith.mulf %72, %74 : vector<2x16x16xf32>
    %c0_19 = arith.constant 0 : index
    %c0_20 = arith.constant 0 : index
    %76 = vector.load %arg9[%c0_19, %c0_20] : memref<8x32xf32, #tpu.memory_space<vmem>>, vector<1x32xf32>
    %c1 = arith.constant 1 : index
    %c0_21 = arith.constant 0 : index
    %77 = vector.load %arg9[%c1, %c0_21] : memref<8x32xf32, #tpu.memory_space<vmem>>, vector<1x32xf32>
    %c2 = arith.constant 2 : index
    %c0_22 = arith.constant 0 : index
    %78 = vector.load %arg9[%c2, %c0_22] : memref<8x32xf32, #tpu.memory_space<vmem>>, vector<1x32xf32>
    %c3 = arith.constant 3 : index
    %c0_23 = arith.constant 0 : index
    %79 = vector.load %arg9[%c3, %c0_23] : memref<8x32xf32, #tpu.memory_space<vmem>>, vector<1x32xf32>
    %c4 = arith.constant 4 : index
    %c0_24 = arith.constant 0 : index
    %80 = vector.load %arg9[%c4, %c0_24] : memref<8x32xf32, #tpu.memory_space<vmem>>, vector<1x32xf32>
    %c5 = arith.constant 5 : index
    %c0_25 = arith.constant 0 : index
    %81 = vector.load %arg9[%c5, %c0_25] : memref<8x32xf32, #tpu.memory_space<vmem>>, vector<1x32xf32>
    %82 = vector.extract_strided_slice %75 {offsets = [0, 0, 0], sizes = [1, 16, 16], strides = [1, 1, 1]} : vector<2x16x16xf32> to vector<1x16x16xf32>
    %83 = vector.shape_cast %82 : vector<1x16x16xf32> to vector<16x16xf32>
    %84 = arith.truncf %83 : vector<16x16xf32> to vector<16x16xbf16>
    %c0_26 = arith.constant 0 : index
    %c0_27 = arith.constant 0 : index
    %85 = vector.load %arg13[%c0_26, %c0_27] : memref<16x32xbf16, #tpu.memory_space<vmem>>, vector<16x16xbf16>
    tpu.vector_store %arg13[%c0_26, %c0_27], %84 {strides = array<i32>} : memref<16x32xbf16, #tpu.memory_space<vmem>>, vector<16x16xbf16>,
    %86 = vector.extract_strided_slice %75 {offsets = [1, 0, 0], sizes = [1, 16, 16], strides = [1, 1, 1]} : vector<2x16x16xf32> to vector<1x16x16xf32>
    %87 = vector.shape_cast %86 : vector<1x16x16xf32> to vector<16x16xf32>
    %88 = arith.truncf %87 : vector<16x16xf32> to vector<16x16xbf16>
    %c0_28 = arith.constant 0 : index
    %c16 = arith.constant 16 : index
    %89 = vector.load %arg13[%c0_28, %c16] : memref<16x32xbf16, #tpu.memory_space<vmem>>, vector<16x16xbf16>
    tpu.vector_store %arg13[%c0_28, %c16], %88 {strides = array<i32>} : memref<16x32xbf16, #tpu.memory_space<vmem>>, vector<16x16xbf16>,
    %c0_29 = arith.constant 0 : index
    %c0_30 = arith.constant 0 : index
    %90 = vector.load %arg13[%c0_29, %c0_30] : memref<16x32xbf16, #tpu.memory_space<vmem>>, vector<16x32xbf16>
    %c0_31 = arith.constant 0 : index
    %c0_32 = arith.constant 0 : index
    %91 = vector.load %arg5[%c0_31, %c0_32] : memref<32x32xbf16, #tpu.memory_space<vmem>>, vector<32x32xbf16>
    %cst_33 = arith.constant dense<0.000000e+00> : vector<16x32xf32>
    %92 = tpu.matmul %90, %91, %cst_33 {dimension_numbers = #tpu.dot_dimension_numbers<[1], [0], [0], [1], [0, 0, 1, 1], [], []>} : vector<16x32xbf16>, vector<32x32xbf16>, vector<16x32xf32> -> vector<16x32xf32>
    %93 = vector.broadcast %76 : vector<1x32xf32> to vector<16x32xf32>
    %94 = arith.addf %92, %93 : vector<16x32xf32>
    %95 = arith.addf %1, %94 : vector<16x32xf32>
    %cst_34 = arith.constant dense<0.000000e+00> : vector<16xf32>
    %96 = vector.multi_reduction <add>, %95, %cst_34 [1] : vector<16x32xf32> to vector<16xf32>
    %97 = vector.shape_cast %96 : vector<16xf32> to vector<16x1xf32>
    %cst_35 = arith.constant 3.200000e+01 : f32
    %98 = vector.broadcast %cst_35 : f32 to vector<16x1xf32>
    %99 = arith.divf %97, %98 : vector<16x1xf32>
    %100 = vector.broadcast %99 : vector<16x1xf32> to vector<16x32xf32>
    %101 = arith.subf %95, %100 : vector<16x32xf32>
    %102 = arith.mulf %101, %101 : vector<16x32xf32>
    %cst_36 = arith.constant dense<0.000000e+00> : vector<16xf32>
    %103 = vector.multi_reduction <add>, %102, %cst_36 [1] : vector<16x32xf32> to vector<16xf32>
    %104 = vector.shape_cast %103 : vector<16xf32> to vector<16x1xf32>
    %cst_37 = arith.constant 3.200000e+01 : f32
    %105 = vector.broadcast %cst_37 : f32 to vector<16x1xf32>
    %106 = arith.divf %104, %105 : vector<16x1xf32>
    %107 = vector.broadcast %99 : vector<16x1xf32> to vector<16x32xf32>
    %108 = arith.subf %95, %107 : vector<16x32xf32>
    %cst_38 = arith.constant 9.99999974E-6 : f32
    %109 = vector.broadcast %cst_38 : f32 to vector<16x1xf32>
    %110 = arith.addf %106, %109 : vector<16x1xf32>
    %111 = math.rsqrt %110 : vector<16x1xf32>
    %112 = vector.broadcast %111 : vector<16x1xf32> to vector<16x32xf32>
    %113 = arith.mulf %108, %112 : vector<16x32xf32>
    %114 = vector.broadcast %78 : vector<1x32xf32> to vector<16x32xf32>
    %115 = arith.mulf %113, %114 : vector<16x32xf32>
    %116 = vector.broadcast %79 : vector<1x32xf32> to vector<16x32xf32>
    %117 = arith.addf %115, %116 : vector<16x32xf32>
    %118 = arith.truncf %117 : vector<16x32xf32> to vector<16x32xbf16>
    %c0_39 = arith.constant 0 : index
    %c0_40 = arith.constant 0 : index
    %119 = vector.load %arg6[%c0_39, %c0_40] : memref<32x128xbf16, #tpu.memory_space<vmem>>, vector<32x128xbf16>
    %cst_41 = arith.constant dense<0.000000e+00> : vector<16x128xf32>
    %120 = tpu.matmul %118, %119, %cst_41 {dimension_numbers = #tpu.dot_dimension_numbers<[1], [0], [0], [1], [0, 0, 1, 1], [], []>} : vector<16x32xbf16>, vector<32x128xbf16>, vector<16x128xf32> -> vector<16x128xf32>
    %c0_42 = arith.constant 0 : index
    %c0_43 = arith.constant 0 : index
    %121 = vector.load %arg7[%c0_42, %c0_43] : memref<1x128xf32, #tpu.memory_space<vmem>>, vector<1x128xf32>
    %122 = vector.broadcast %121 : vector<1x128xf32> to vector<16x128xf32>
    %123 = arith.addf %120, %122 : vector<16x128xf32>
    %124 = arith.mulf %123, %123 : vector<16x128xf32>
    %125 = arith.mulf %123, %124 : vector<16x128xf32>
    %cst_44 = arith.constant 4.471500e-02 : f32
    %126 = vector.broadcast %cst_44 : f32 to vector<16x128xf32>
    %127 = arith.mulf %126, %125 : vector<16x128xf32>
    %128 = arith.addf %123, %127 : vector<16x128xf32>
    %cst_45 = arith.constant 0.797884583 : f32
    %129 = vector.broadcast %cst_45 : f32 to vector<16x128xf32>
    %130 = arith.mulf %129, %128 : vector<16x128xf32>
    %131 = math.tanh %130 : vector<16x128xf32>
    %cst_46 = arith.constant 1.000000e+00 : f32
    %132 = vector.broadcast %cst_46 : f32 to vector<16x128xf32>
    %133 = arith.addf %132, %131 : vector<16x128xf32>
    %cst_47 = arith.constant 5.000000e-01 : f32
    %134 = vector.broadcast %cst_47 : f32 to vector<16x128xf32>
    %135 = arith.mulf %134, %133 : vector<16x128xf32>
    %136 = arith.mulf %123, %135 : vector<16x128xf32>
    %137 = arith.truncf %136 : vector<16x128xf32> to vector<16x128xbf16>
    %c0_48 = arith.constant 0 : index
    %c0_49 = arith.constant 0 : index
    %138 = vector.load %arg8[%c0_48, %c0_49] : memref<128x32xbf16, #tpu.memory_space<vmem>>, vector<128x32xbf16>
    %cst_50 = arith.constant dense<0.000000e+00> : vector<16x32xf32>
    %139 = tpu.matmul %137, %138, %cst_50 {dimension_numbers = #tpu.dot_dimension_numbers<[1], [0], [0], [1], [0, 0, 1, 1], [], []>} : vector<16x128xbf16>, vector<128x32xbf16>, vector<16x32xf32> -> vector<16x32xf32>
    %140 = vector.broadcast %77 : vector<1x32xf32> to vector<16x32xf32>
    %141 = arith.addf %139, %140 : vector<16x32xf32>
    %142 = arith.addf %117, %141 : vector<16x32xf32>
    %cst_51 = arith.constant dense<0.000000e+00> : vector<16xf32>
    %143 = vector.multi_reduction <add>, %142, %cst_51 [1] : vector<16x32xf32> to vector<16xf32>
    %144 = vector.shape_cast %143 : vector<16xf32> to vector<16x1xf32>
    %cst_52 = arith.constant 3.200000e+01 : f32
    %145 = vector.broadcast %cst_52 : f32 to vector<16x1xf32>
    %146 = arith.divf %144, %145 : vector<16x1xf32>
    %147 = vector.broadcast %146 : vector<16x1xf32> to vector<16x32xf32>
    %148 = arith.subf %142, %147 : vector<16x32xf32>
    %149 = arith.mulf %148, %148 : vector<16x32xf32>
    %cst_53 = arith.constant dense<0.000000e+00> : vector<16xf32>
    %150 = vector.multi_reduction <add>, %149, %cst_53 [1] : vector<16x32xf32> to vector<16xf32>
    %151 = vector.shape_cast %150 : vector<16xf32> to vector<16x1xf32>
    %cst_54 = arith.constant 3.200000e+01 : f32
    %152 = vector.broadcast %cst_54 : f32 to vector<16x1xf32>
    %153 = arith.divf %151, %152 : vector<16x1xf32>
    %154 = vector.broadcast %146 : vector<16x1xf32> to vector<16x32xf32>
    %155 = arith.subf %142, %154 : vector<16x32xf32>
    %cst_55 = arith.constant 9.99999974E-6 : f32
    %156 = vector.broadcast %cst_55 : f32 to vector<16x1xf32>
    %157 = arith.addf %153, %156 : vector<16x1xf32>
    %158 = math.rsqrt %157 : vector<16x1xf32>
    %159 = vector.broadcast %158 : vector<16x1xf32> to vector<16x32xf32>
    %160 = arith.mulf %155, %159 : vector<16x32xf32>
    %161 = vector.broadcast %80 : vector<1x32xf32> to vector<16x32xf32>
    %162 = arith.mulf %160, %161 : vector<16x32xf32>
    %163 = vector.broadcast %81 : vector<1x32xf32> to vector<16x32xf32>
    %164 = arith.addf %162, %163 : vector<16x32xf32>
    %c0_56 = arith.constant 0 : index
    %c0_57 = arith.constant 0 : index
    %c0_58 = arith.constant 0 : index
    %165 = vector.load %arg10[%c0_56, %c0_57, %c0_58] : memref<1x16x32xf32, #tpu.memory_space<vmem>>, vector<1x16x32xf32>
    %166 = vector.shape_cast %165 : vector<1x16x32xf32> to vector<16x32xf32>
    %167 = vector.shape_cast %164 : vector<16x32xf32> to vector<1x16x32xf32>
    tpu.vector_store %arg10[%c0_56, %c0_57, %c0_58], %167 {strides = array<i32>} : memref<1x16x32xf32, #tpu.memory_space<vmem>>, vector<1x16x32xf32>,
    return
  }
  func.func @transform_0(%arg0: i32, %arg1: i32) -> (i32, i32, i32) {
    %c0_i32 = arith.constant 0 : i32
    %c0_i32_0 = arith.constant 0 : i32
    return %arg0, %arg1, %c0_i32 : i32, i32, i32
  }
  func.func @transform_1(%arg0: i32, %arg1: i32) -> (i32, i32) {
    %c0_i32 = arith.constant 0 : i32
    %c0_i32_0 = arith.constant 0 : i32
    %c0_i32_1 = arith.constant 0 : i32
    return %c0_i32, %c0_i32_0 : i32, i32
  }
  func.func @transform_2(%arg0: i32, %arg1: i32) -> (i32, i32) {
    %c0_i32 = arith.constant 0 : i32
    %c0_i32_0 = arith.constant 0 : i32
    %c0_i32_1 = arith.constant 0 : i32
    return %c0_i32, %c0_i32_0 : i32, i32
  }
  func.func @transform_3(%arg0: i32, %arg1: i32) -> (i32, i32) {
    %c0_i32 = arith.constant 0 : i32
    %c0_i32_0 = arith.constant 0 : i32
    %c0_i32_1 = arith.constant 0 : i32
    return %c0_i32, %c0_i32_0 : i32, i32
  }
  func.func @transform_4(%arg0: i32, %arg1: i32) -> (i32, i32) {
    %c0_i32 = arith.constant 0 : i32
    %c0_i32_0 = arith.constant 0 : i32
    %c0_i32_1 = arith.constant 0 : i32
    return %c0_i32, %c0_i32_0 : i32, i32
  }
  func.func @transform_5(%arg0: i32, %arg1: i32) -> (i32, i32) {
    %c0_i32 = arith.constant 0 : i32
    %c0_i32_0 = arith.constant 0 : i32
    %c0_i32_1 = arith.constant 0 : i32
    return %c0_i32, %c0_i32_0 : i32, i32
  }
  func.func @transform_6(%arg0: i32, %arg1: i32) -> (i32, i32) {
    %c0_i32 = arith.constant 0 : i32
    %c0_i32_0 = arith.constant 0 : i32
    %c0_i32_1 = arith.constant 0 : i32
    return %c0_i32, %c0_i32_0 : i32, i32
  }
  func.func @transform_7(%arg0: i32, %arg1: i32) -> (i32, i32) {
    %c0_i32 = arith.constant 0 : i32
    %c0_i32_0 = arith.constant 0 : i32
    %c0_i32_1 = arith.constant 0 : i32
    return %c0_i32, %c0_i32_0 : i32, i32
  }
  func.func @transform_8(%arg0: i32, %arg1: i32) -> (i32, i32, i32) {
    %c0_i32 = arith.constant 0 : i32
    %c0_i32_0 = arith.constant 0 : i32
    return %arg0, %arg1, %c0_i32 : i32, i32, i32
  }
}

</mosaic_0001>

<llo_original>
// kernel: tpu_custom_call.1
$region0: #{tpu_custom_call.1}
  #allocation0 [shape = 'u32[]', space=smem, size = 0x4, offset = 0x4, fixed_abs, tag = 'smem constant byte address 0x4 - core index']
  #allocation1 [shape = 'u32[144,128]{1,0:T(1,128)}', space=vmem, size = 0x12000, scoped, tag = 'internal scratch']
  #allocation2 [shape = 'bf16[32,32]{1,0:T(8,128)(2,1)}', space=vmem, size = 0x2000, scoped, tag = 'scratch operand']
  #allocation3 [shape = 'bf16[32,32]{1,0:T(8,128)(2,1)}', space=vmem, size = 0x2000, scoped, tag = 'scratch operand']
  #allocation4 [shape = 'bf16[16,32]{1,0:T(8,128)(2,1)}', space=vmem, size = 0x1000, scoped, tag = 'scratch operand']
  %s0 = inlined_call_operand.vmem [shape: f32[2,32,32], index: 0, kind: input, shape index: {}]
  %s1 = inlined_call_operand.vmem [shape: bf16[32,96], index: 1, kind: input, shape index: {}]
  %s2 = inlined_call_operand.vmem [shape: f32[1,96], index: 2, kind: input, shape index: {}]
  %s3 = inlined_call_operand.hbm [shape: bf16[32,32], index: 3, kind: input, shape index: {}]
  %s4 = inlined_call_operand.hbm [shape: bf16[32,128], index: 4, kind: input, shape index: {}]
  %s5 = inlined_call_operand.hbm [shape: f32[1,128], index: 5, kind: input, shape index: {}]
  %s6 = inlined_call_operand.vmem [shape: bf16[128,32], index: 6, kind: input, shape index: {}]
  %s7 = inlined_call_operand.vmem [shape: f32[8,32], index: 7, kind: input, shape index: {}]
  %s8 = inlined_call_operand.hbm [shape: f32[2,32,32], index: 8, kind: output, shape index: {}]
  %s9 = sld [smem:[#allocation0]]
  $region84: #{tpu_custom_call.1} parent=0
    _
  %s11 = ssub.s32 1, %s9
  %s12 = scalar_select 0, %s11, %s9
  $region1: #{tpu_custom_call.1} parent=0
    #allocation5 [shape = 'u8[8192]{0}', space=vmem, size = 0x2000, scoped, tag = 'input window, operand 3, single buffered']
    #allocation6 [shape = 's32[2]{0}', space=sflag, size = 0x8, scoped, tag = 'scoped memory for tpu_custom_call.1']
    #allocation7 [shape = 's32[2]{0}', space=sflag, size = 0x8, scoped, tag = 'scoped memory for tpu_custom_call.1']
    #allocation8 [shape = 'u8[8192]{0}', space=vmem, size = 0x2000, scoped, tag = 'input window, operand 4, single buffered']
    #allocation9 [shape = 's32[1]{0}', space=sflag, size = 0x4, scoped, tag = 'scoped memory for tpu_custom_call.1']
    #allocation10 [shape = 'u8[512]{0}', space=vmem, size = 0x400, scoped, tag = 'input window, operand 5, single buffered']
    #allocation11 [shape = 'u8[16384]{0}', space=vmem, size = 0x4000, scoped, tag = 'output window, operand 0']
    %13 = vsyncpa [#allocation6], 0
    %14 = vsyncpa [#allocation9], 0
    %15 = vsyncpa [#allocation7], 0
    %s16 = scalar_lea.sflag [#allocation7], 1
    %17 = vsyncpa %s16, 0
    loop: start=0, step=1, limit=6
    $region2: #{tpu_custom_call.1} parent=1 // loop_pre_header
      _
    $region3: #{tpu_custom_call.1} parent=1 // loop_header
      %s19 = sphi 0, %s23
      %p20 = scmp.ge.s32.totalorder %s19, 6
      %s26 = sphi 0, %s38
      %s27 = sphi 0, %s34
      %s28 = sphi 0, %s26
      %s29 = sphi 0, %s27
      %s30 = sphi 0, %s28
      %s31 = sphi 0, %s29
      %s43 = sphi 0, %s45
      %s46 = sphi 0, %s43
      %s47 = sphi 0, %s46
      %s63 = sphi 0, %s47
      %s67 = sphi 0, %s67
      %s69 = sphi 0, %s67
      %s70 = sphi 0, %s69
      %s84 = sphi 0, %s70
      %s88 = sphi 0, %s88
      %s90 = sphi 0, %s88
      %s91 = sphi 0, %s90
      %s105 = sphi 0, %s91
      %s109 = sphi 0, %s109
      %s111 = sphi 0, %s109
      %s112 = sphi 0, %s111
      %s126 = sphi 0, %s112
      %s130 = sphi 0, %s130
      %s132 = sphi 0, %s130
      %s133 = sphi 0, %s132
      %s147 = sphi 0, %s133
      %s151 = sphi 0, %s151
      %s153 = sphi 0, %s151
      %s154 = sphi 0, %s153
      %s168 = sphi 0, %s154
      %s172 = sphi 0, %s172
      %s174 = sphi 0, %s172
      %s175 = sphi 0, %s174
      %s189 = sphi 0, %s175
      %s193 = sphi 0, %s193
      %s195 = sphi 0, %s193
      %s196 = sphi 0, %s195
      %s210 = sphi 0, %s196
      %s218 = sphi 0, %s220
      %s221 = sphi 0, %s218
      %s222 = sphi 0, %s221
      %s238 = sphi 0, %s222
    $region4: #{tpu_custom_call.1} parent=1 // loop_header_branch
      %22 = sbr.rel (%p20) target = $region8
    $region5: #{tpu_custom_call.1} parent=1 // loop_body
      %s24 = ssub.s32 %s19, 1
      %s25 = ssub.s32 %s19, 2
      %s32 = sadd.s32 1, %s27
      %p33 = scmp.ge.s32.totalorder %s32, 2
      %s34 = scalar_select %p33, 0, %s32
      %s35 = sadd.s32 1, %s26
      %s36 = scalar_select %p33, %s35, %s26
      %p37 = scmp.ge.s32.totalorder %s36, 2
      %s38 = scalar_select %p37, 0, %s36
      %s39 = ssub.s32 %s26, %s38
      %s40 = ssub.s32 %s27, %s34
      %s41 = sor.u32 %s39, %s40
      %p42 = scmp.eq.s32.totalorder %s41, 0
      %s44 = sadd.s32 %s43, 1
      %s45 = scalar_select %p42, %s43, %s44
      %p48 = pneg %p42
      %p49 = scmp.eq.s32.totalorder %s19, 3
      %p50 = por %p48, %p49
      %p51 = scmp.ne.s32.totalorder %s43, %s46
      %p52 = scmp.eq.s32.totalorder %s19, 0
      %p53 = por %p51, %p52
      %p54 = scmp.ne.s32.totalorder %s43, %s46
      %p55 = scmp.eq.s32.totalorder %s24, 3
      %p56 = por %p54, %p55
      %p57 = scmp.ne.s32.totalorder %s46, %s47
      %p58 = scmp.eq.s32.totalorder %s24, 0
      %p59 = por %p57, %p58
      %p60 = scmp.ne.s32.totalorder %s46, %s47
      %p61 = scmp.eq.s32.totalorder %s25, 3
      %p62 = por %p60, %p61
      %p64 = scmp.ne.s32.totalorder %s47, %s63
      %p65 = scmp.eq.s32.totalorder %s25, 0
      %p66 = por %p64, %p65
      %s68 = sadd.s32 %s67, 1
      %p71 = scmp.eq.s32.totalorder %s19, 3
      %p72 = scmp.ne.s32.totalorder %s67, %s69
      %p73 = scmp.eq.s32.totalorder %s19, 0
      %p74 = por %p72, %p73
      %p75 = scmp.ne.s32.totalorder %s67, %s69
      %p76 = scmp.eq.s32.totalorder %s24, 3
      %p77 = por %p75, %p76
      %p78 = scmp.ne.s32.totalorder %s69, %s70
      %p79 = scmp.eq.s32.totalorder %s24, 0
      %p80 = por %p78, %p79
      %p81 = scmp.ne.s32.totalorder %s69, %s70
      %p82 = scmp.eq.s32.totalorder %s25, 3
      %p83 = por %p81, %p82
      %p85 = scmp.ne.s32.totalorder %s70, %s84
      %p86 = scmp.eq.s32.totalorder %s25, 0
      %p87 = por %p85, %p86
      %s89 = sadd.s32 %s88, 1
      %p92 = scmp.eq.s32.totalorder %s19, 3
      %p93 = scmp.ne.s32.totalorder %s88, %s90
      %p94 = scmp.eq.s32.totalorder %s19, 0
      %p95 = por %p93, %p94
      %p96 = scmp.ne.s32.totalorder %s88, %s90
      %p97 = scmp.eq.s32.totalorder %s24, 3
      %p98 = por %p96, %p97
      %p99 = scmp.ne.s32.totalorder %s90, %s91
      %p100 = scmp.eq.s32.totalorder %s24, 0
      %p101 = por %p99, %p100
      %p102 = scmp.ne.s32.totalorder %s90, %s91
      %p103 = scmp.eq.s32.totalorder %s25, 3
      %p104 = por %p102, %p103
      %p106 = scmp.ne.s32.totalorder %s91, %s105
      %p107 = scmp.eq.s32.totalorder %s25, 0
      %p108 = por %p106, %p107
      %s110 = sadd.s32 %s109, 1
      %p113 = scmp.eq.s32.totalorder %s19, 3
      %p114 = scmp.ne.s32.totalorder %s109, %s111
      %p115 = scmp.eq.s32.totalorder %s19, 0
      %p116 = por %p114, %p115
      %p117 = scmp.ne.s32.totalorder %s109, %s111
      %p118 = scmp.eq.s32.totalorder %s24, 3
      %p119 = por %p117, %p118
      %p120 = scmp.ne.s32.totalorder %s111, %s112
      %p121 = scmp.eq.s32.totalorder %s24, 0
      %p122 = por %p120, %p121
      %p123 = scmp.ne.s32.totalorder %s111, %s112
      %p124 = scmp.eq.s32.totalorder %s25, 3
      %p125 = por %p123, %p124
      %p127 = scmp.ne.s32.totalorder %s112, %s126
      %p128 = scmp.eq.s32.totalorder %s25, 0
      %p129 = por %p127, %p128
      %s131 = sadd.s32 %s130, 1
      %p134 = scmp.eq.s32.totalorder %s19, 3
      %p135 = scmp.ne.s32.totalorder %s130, %s132
      %p136 = scmp.eq.s32.totalorder %s19, 0
      %p137 = por %p135, %p136
      %p138 = scmp.ne.s32.totalorder %s130, %s132
      %p139 = scmp.eq.s32.totalorder %s24, 3
      %p140 = por %p138, %p139
      %p141 = scmp.ne.s32.totalorder %s132, %s133
      %p142 = scmp.eq.s32.totalorder %s24, 0
      %p143 = por %p141, %p142
      %p144 = scmp.ne.s32.totalorder %s132, %s133
      %p145 = scmp.eq.s32.totalorder %s25, 3
      %p146 = por %p144, %p145
      %p148 = scmp.ne.s32.totalorder %s133, %s147
      %p149 = scmp.eq.s32.totalorder %s25, 0
      %p150 = por %p148, %p149
      %s152 = sadd.s32 %s151, 1
      %p155 = scmp.eq.s32.totalorder %s19, 3
      %p156 = scmp.ne.s32.totalorder %s151, %s153
      %p157 = scmp.eq.s32.totalorder %s19, 0
      %p158 = por %p156, %p157
      %p159 = scmp.ne.s32.totalorder %s151, %s153
      %p160 = scmp.eq.s32.totalorder %s24, 3
      %p161 = por %p159, %p160
      %p162 = scmp.ne.s32.totalorder %s153, %s154
      %p163 = scmp.eq.s32.totalorder %s24, 0
      %p164 = por %p162, %p163
      %p165 = scmp.ne.s32.totalorder %s153, %s154
      %p166 = scmp.eq.s32.totalorder %s25, 3
      %p167 = por %p165, %p166
      %p169 = scmp.ne.s32.totalorder %s154, %s168
      %p170 = scmp.eq.s32.totalorder %s25, 0
      %p171 = por %p169, %p170
      %s173 = sadd.s32 %s172, 1
      %p176 = scmp.eq.s32.totalorder %s19, 3
      %p177 = scmp.ne.s32.totalorder %s172, %s174
      %p178 = scmp.eq.s32.totalorder %s19, 0
      %p179 = por %p177, %p178
      %p180 = scmp.ne.s32.totalorder %s172, %s174
      %p181 = scmp.eq.s32.totalorder %s24, 3
      %p182 = por %p180, %p181
      %p183 = scmp.ne.s32.totalorder %s174, %s175
      %p184 = scmp.eq.s32.totalorder %s24, 0
      %p185 = por %p183, %p184
      %p186 = scmp.ne.s32.totalorder %s174, %s175
      %p187 = scmp.eq.s32.totalorder %s25, 3
      %p188 = por %p186, %p187
      %p190 = scmp.ne.s32.totalorder %s175, %s189
      %p191 = scmp.eq.s32.totalorder %s25, 0
      %p192 = por %p190, %p191
      %s194 = sadd.s32 %s193, 1
      %p197 = scmp.eq.s32.totalorder %s19, 3
      %p198 = scmp.ne.s32.totalorder %s193, %s195
      %p199 = scmp.eq.s32.totalorder %s19, 0
      %p200 = por %p198, %p199
      %p201 = scmp.ne.s32.totalorder %s193, %s195
      %p202 = scmp.eq.s32.totalorder %s24, 3
      %p203 = por %p201, %p202
      %p204 = scmp.ne.s32.totalorder %s195, %s196
      %p205 = scmp.eq.s32.totalorder %s24, 0
      %p206 = por %p204, %p205
      %p207 = scmp.ne.s32.totalorder %s195, %s196
      %p208 = scmp.eq.s32.totalorder %s25, 3
      %p209 = por %p207, %p208
      %p211 = scmp.ne.s32.totalorder %s196, %s210
      %p212 = scmp.eq.s32.totalorder %s25, 0
      %p213 = por %p211, %p212
      %s214 = ssub.s32 %s26, %s38
      %s215 = ssub.s32 %s27, %s34
      %s216 = sor.u32 %s214, %s215
      %p217 = scmp.eq.s32.totalorder %s216, 0
      %s219 = sadd.s32 %s218, 1
      %s220 = scalar_select %p217, %s218, %s219
      %p223 = pneg %p217
      %p224 = scmp.eq.s32.totalorder %s19, 3
      %p225 = por %p223, %p224
      %p226 = scmp.ne.s32.totalorder %s218, %s221
      %p227 = scmp.eq.s32.totalorder %s19, 0
      %p228 = por %p226, %p227
      %p229 = scmp.ne.s32.totalorder %s218, %s221
      %p230 = scmp.eq.s32.totalorder %s24, 3
      %p231 = por %p229, %p230
      %p232 = scmp.ne.s32.totalorder %s221, %s222
      %p233 = scmp.eq.s32.totalorder %s24, 0
      %p234 = por %p232, %p233
      %p235 = scmp.ne.s32.totalorder %s221, %s222
      %p236 = scmp.eq.s32.totalorder %s25, 3
      %p237 = por %p235, %p236
      %p239 = scmp.ne.s32.totalorder %s222, %s238
      %p240 = scmp.eq.s32.totalorder %s25, 0
      %p241 = por %p239, %p240
      %p242 = scmp.le.s32.totalorder 1, %s19
      %p243 = scmp.lt.s32.totalorder %s19, 5
      %p244 = pnand %p242, %p243
      %p245 = pneg %p244
      // Predicated region
      $region9: #{tpu_custom_call.1} parent=5 // pred_check
        _
      $region10: #{tpu_custom_call.1} parent=5 // pred_check_branch
        %247 = sbr.rel (%p244) target = $region12
      $region11: #{tpu_custom_call.1} parent=5 // pred_region
        %s248 = ssub.s32 %s19, 1
        // Predicated region
        $region13: #{tpu_custom_call.1} parent=11 // pred_check
          %p249 = pneg %p80
        $region14: #{tpu_custom_call.1} parent=11 // pred_check_branch
          %251 = sbr.rel (%p249) target = $region16
        $region15: #{tpu_custom_call.1} parent=11 // pred_region
          _
        $region16: #{tpu_custom_call.1} parent=11 // pred_fallthru
          _
        // Predicated region
        $region17: #{tpu_custom_call.1} parent=11 // pred_check
          %p252 = pneg %p101
        $region18: #{tpu_custom_call.1} parent=11 // pred_check_branch
          %254 = sbr.rel (%p252) target = $region20
        $region19: #{tpu_custom_call.1} parent=11 // pred_region
          _
        $region20: #{tpu_custom_call.1} parent=11 // pred_fallthru
          _
        // Predicated region
        $region21: #{tpu_custom_call.1} parent=11 // pred_check
          %p255 = pneg %p122
        $region22: #{tpu_custom_call.1} parent=11 // pred_check_branch
          %257 = sbr.rel (%p255) target = $region24
        $region23: #{tpu_custom_call.1} parent=11 // pred_region
          %s259 = ssub.s32 256, 256
          %260 = vsyncadd [#allocation6], %s259
          %s261 = sshll.u32 [#allocation5], 4
          %s262 = int_to_ptr.vmem [resolvable:$true] %s261
          %267 = dma.hbm_to_vmem [thread:$0]  %s3, 256, %s262, [#allocation6], 64, 64, 4
        $region24: #{tpu_custom_call.1} parent=11 // pred_fallthru
          _
        // Predicated region
        $region25: #{tpu_custom_call.1} parent=11 // pred_check
          %p268 = pneg %p143
        $region26: #{tpu_custom_call.1} parent=11 // pred_check_branch
          %270 = sbr.rel (%p268) target = $region28
        $region27: #{tpu_custom_call.1} parent=11 // pred_region
          %s272 = ssub.s32 256, 256
          %273 = vsyncadd [#allocation9], %s272
          %s274 = sshll.u32 [#allocation8], 4
          %s275 = int_to_ptr.vmem [resolvable:$true] %s274
          %280 = dma.hbm_to_vmem [thread:$0]  %s4, 256, %s275, [#allocation9], 64, 64, 4
        $region28: #{tpu_custom_call.1} parent=11 // pred_fallthru
          _
        // Predicated region
        $region29: #{tpu_custom_call.1} parent=11 // pred_check
          %p281 = pneg %p164
        $region30: #{tpu_custom_call.1} parent=11 // pred_check_branch
          %283 = sbr.rel (%p281) target = $region32
        $region31: #{tpu_custom_call.1} parent=11 // pred_region
          %s285 = ssub.s32 16, 16
          %286 = vsyncadd [#allocation9], %s285
          %s288 = sshll.u32 [#allocation10], 4
          %s289 = int_to_ptr.vmem [resolvable:$true] %s288
          %291 = dma.hbm_to_vmem [thread:$0]  %s5, 16, %s289, [#allocation9]
        $region32: #{tpu_custom_call.1} parent=11 // pred_fallthru
          _
        // Predicated region
        $region33: #{tpu_custom_call.1} parent=11 // pred_check
          %p292 = pneg %p185
        $region34: #{tpu_custom_call.1} parent=11 // pred_check_branch
          %294 = sbr.rel (%p292) target = $region36
        $region35: #{tpu_custom_call.1} parent=11 // pred_region
          _
        $region36: #{tpu_custom_call.1} parent=11 // pred_fallthru
          _
        // Predicated region
        $region37: #{tpu_custom_call.1} parent=11 // pred_check
          %p295 = pneg %p206
        $region38: #{tpu_custom_call.1} parent=11 // pred_check_branch
          %297 = sbr.rel (%p295) target = $region40
        $region39: #{tpu_custom_call.1} parent=11 // pred_region
          _
        $region40: #{tpu_custom_call.1} parent=11 // pred_fallthru
          _
      $region12: #{tpu_custom_call.1} parent=5 // pred_fallthru
        _
      %p298 = scmp.lt.s32.totalorder %s19, 4
      // Predicated region
      $region41: #{tpu_custom_call.1} parent=5 // pred_check
        %p299 = pneg %p298
      $region42: #{tpu_custom_call.1} parent=5 // pred_check_branch
        %301 = sbr.rel (%p299) target = $region44
      $region43: #{tpu_custom_call.1} parent=5 // pred_region
        // Predicated region
        $region45: #{tpu_custom_call.1} parent=43 // pred_check
          %p302 = pneg %p53
        $region46: #{tpu_custom_call.1} parent=43 // pred_check_branch
          %304 = sbr.rel (%p302) target = $region48
        $region47: #{tpu_custom_call.1} parent=43 // pred_region
          %s305 = smul.u32 2, %s27
          %p306 = scmp.lt.s32.totalorder %s26, 1
          %s307 = scalar_select %p306, %s26, 1
          %p308 = scmp.lt.s32.totalorder %s305, 3
          %s309 = scalar_select %p308, %s305, 3
          %s310 = smul.addr %s307, 4
          %s311 = sadd.s32 %s309, %s310
          %s312 = smul.addr %s311, 8
          %s313 = scalar_lea.vmem %s0, %s312
          %s314 = smul.u32 2, %s27
        $region48: #{tpu_custom_call.1} parent=43 // pred_fallthru
          _
      $region44: #{tpu_custom_call.1} parent=5 // pred_fallthru
        _
      %p315 = scmp.le.s32.totalorder 1, %s19
      %p316 = scmp.lt.s32.totalorder %s19, 5
      %p317 = pnand %p315, %p316
      %p318 = pneg %p317
      // Predicated region
      $region49: #{tpu_custom_call.1} parent=5 // pred_check
        _
      $region50: #{tpu_custom_call.1} parent=5 // pred_check_branch
        %320 = sbr.rel (%p317) target = $region52
      $region51: #{tpu_custom_call.1} parent=5 // pred_region
        %s321 = ssub.s32 %s19, 1
        // Predicated region
        $region53: #{tpu_custom_call.1} parent=51 // pred_check
          %p322 = pneg %p122
        $region54: #{tpu_custom_call.1} parent=51 // pred_check_branch
          %324 = sbr.rel (%p322) target = $region56
        $region55: #{tpu_custom_call.1} parent=51 // pred_region
          %325 = dma.done [#allocation6], 256
        $region56: #{tpu_custom_call.1} parent=51 // pred_fallthru
          _
        // Predicated region
        $region57: #{tpu_custom_call.1} parent=51 // pred_check
          %p326 = pneg %p143
        $region58: #{tpu_custom_call.1} parent=51 // pred_check_branch
          %328 = sbr.rel (%p326) target = $region60
        $region59: #{tpu_custom_call.1} parent=51 // pred_region
          %329 = dma.done [#allocation9], 256
        $region60: #{tpu_custom_call.1} parent=51 // pred_fallthru
          _
        // Predicated region
        $region61: #{tpu_custom_call.1} parent=51 // pred_check
          %p330 = pneg %p164
        $region62: #{tpu_custom_call.1} parent=51 // pred_check_branch
          %332 = sbr.rel (%p330) target = $region64
        $region63: #{tpu_custom_call.1} parent=51 // pred_region
          %333 = dma.done [#allocation9], 16
        $region64: #{tpu_custom_call.1} parent=51 // pred_fallthru
          _
        %s334 = smul.u32 2, %s29
        %p335 = scmp.lt.s32.totalorder %s28, 1
        %s336 = scalar_select %p335, %s28, 1
        %p337 = scmp.lt.s32.totalorder %s334, 3
        %s338 = scalar_select %p337, %s334, 3
        %s339 = smul.addr %s336, 4
        %s340 = sadd.s32 %s338, %s339
        %s341 = smul.addr %s340, 8
        %s342 = scalar_lea.vmem %s0, %s341
        %p343 = pneg %p59
        %p344 = pneg %p56
        %p345 = pneg %p80
        %p346 = pneg %p77
        %p347 = pneg %p101
        %p348 = pneg %p98
        %p349 = pneg %p122
        %p350 = pneg %p119
        %p351 = pneg %p143
        %p352 = pneg %p140
        %p353 = pneg %p164
        %p354 = pneg %p161
        %p355 = pneg %p185
        %p356 = pneg %p182
        %p357 = pneg %p206
        %p358 = pneg %p203
        %p359 = pneg %p234
        %p360 = pneg %p231
        %s361 = sand.u32 %s221, 1
        %s362 = scalar_lea.sflag [#allocation7], %s361
        %s363 = sand.u32 %s221, 1
        %s364 = smul.addr %s363, 16
        %s365 = scalar_lea.vmem [#allocation11], %s364
        %s366 = smul.u32 2, %s29
        %p367 = scmp.lt.s32.totalorder %s28, 1
        %s368 = scalar_select %p367, %s28, 1
        %p369 = scmp.lt.s32.totalorder %s366, 3
        %s370 = scalar_select %p369, %s366, 3
        %s371 = smul.addr %s368, 4
        %s372 = sadd.s32 %s370, %s371
        %s373 = smul.addr %s372, 8
        %s374 = scalar_lea.vmem %s0, %s373
        %s375 = smul.u32 2, %s29
        %s376 = smul.u32 2, %s29
        %v378 = vld [vmem:[%s374] sm:$0xff]
        %v379 = vld [vmem:[%s374 + $0x8] sm:$0xff]
        %s380 = smul.u32 %s29, 16
        %v381 = vpack.c.bf16 %v379, %v378
        %v382 = vld [vmem:[%s1] sm:$0xf]
        %v383 = vld [vmem:[%s1 + $0x4] sm:$0xf]
        %v384 = vld [vmem:[%s1 + $0x8] sm:$0xf]
        %v385 = vld [vmem:[%s1 + $0xc] sm:$0xf]
        %v386 = vld [vmem:[%s2] sm:$0x1]
        %v388 = vlaneseq
        %v389 = vshrl.u32 %v388, 7
        %v390 = vsub.s32 0, %v389
        %v391 = vrot.slane %v386, %v390
        %v397 = vunpack.c.l.b16 %v382
        %v398 = vunpack.c.l.b16 %v383
        %v399 = vunpack.c.l.b16 %v384
        %v400 = vunpack.c.l.b16 %v385
        %v401 = vpack.c.b16 %v398, %v397
        %v402 = vpack.c.b16 %v400, %v399
        %vm405 = vcmask 261120
        %v407 = vsel %vm405, %v381, 0
        %409 = vmatprep.subr.bf16.mxu0 0
        %410 = vmatpush1.bf16.msra.mxu0 0
        %411 = vmatprep.subr.bf16.mxu0 0
        %412 = vmatpush1.bf16.msra.mxu0 0
        %413 = vmatprep.subr.bf16.mxu0 0
        %414 = vmatpush1.bf16.msra.mxu0 0
        %415 = vmatprep.subr.bf16.mxu0 0
        %416 = vmatpush1.bf16.msra.mxu0 0
        %417 = vmatprep.subr.bf16.mxu0 0
        %418 = vmatpush1.bf16.msra.mxu0 0
        %419 = vmatprep.subr.bf16.mxu0 0
        %420 = vmatpush1.bf16.msra.mxu0 0
        %421 = vmatprep.subr.bf16.mxu0 0
        %422 = vmatpush1.bf16.msra.mxu0 %v402
        %423 = vmatprep.subr.bf16.mxu0 0
        %424 = vmatpush1.bf16.msra.mxu0 %v401
        %425 = vmatprep.subr.bf16.mxu0 0
        %426 = vmatpush2.bf16.msra.mxu0 0
        %427 = vmatprep.subr.bf16.mxu0 0
        %428 = vmatpush2.bf16.msra.mxu0 0
        %429 = vmatprep.subr.bf16.mxu0 0
        %430 = vmatpush2.bf16.msra.mxu0 0
        %431 = vmatprep.subr.bf16.mxu0 0
        %432 = vmatpush2.bf16.msra.mxu0 0
        %433 = vmatprep.subr.bf16.mxu0 0
        %434 = vmatpush2.bf16.msra.mxu0 0
        %435 = vmatprep.subr.bf16.mxu0 0
        %436 = vmatpush2.bf16.msra.mxu0 0
        %437 = vmatprep.subr.bf16.mxu0 0
        %438 = vmatpush2.bf16.msra.mxu0 0
        %439 = vmatprep.subr.bf16.mxu0 0
        %440 = vmatpush2.bf16.msra.mxu0 0
        %441 = vmatprep.mubr.bf16.mxu0 0
        %442 = vmatmul.mubr.bf16.gmra.mxu0 %v407
        %v443 = vpop.f32.mrf.mxu0
        %v444 = vadd.f32 %v391, %v443
        %v445 = vpop.f32.mrf.mxu0
        %v446 = vpop.f32.mrf.mxu0
        %v447 = vadd.f32 %v391, %v446
        %v448 = vpop.f32.mrf.mxu0
        %449 = vdwg.mxu0
        %v450 = vmul.f32 %v444, 0.25
        %v451 = vmul.f32 %v447, 0.25
        %v452 = vpack.c.bf16 %v451, %v450
        %v454 = vunpack.c.l.b16 %v452
        %v455 = vunpack.c.h.b16 %v452
        %v456 = vpack.c.b16 %v454, %v454
        %v457 = vpack.c.b16 %v455, %v455
        %458 = vrot.lane.b32.xlu0 %v456, 96
        %v459 = vpop.permute.xlu0 %458
        %460 = vrot.lane.b32.xlu0 %v457, 96
        %v461 = vpop.permute.xlu0 %460
        %s464 = sshra.s32 %s380, 3
        %s465 = sand.u32 %s380, 7
        %s466 = smul.addr %s464, 4
        %s467 = scalar_lea.vmem [#allocation2], %s466
        %vm468 = vcmask 257024
        %469 = vst.msk [vmem:[%s467] sm:$0xf] %vm468, %v459
        %470 = vst.msk [vmem:[%s467 + $0x4] sm:$0xf] %vm468, %v461
        %v471 = vpack.c.bf16 %v447, %v444
        %v473 = vunpack.c.l.b16 %v471
        %v474 = vunpack.c.h.b16 %v471
        %v475 = vpack.c.b16 %v473, %v473
        %v476 = vpack.c.b16 %v474, %v474
        %477 = vrot.lane.b32.xlu0 %v475, 64
        %v478 = vpop.permute.xlu0 %477
        %479 = vrot.lane.b32.xlu0 %v476, 64
        %v480 = vpop.permute.xlu0 %479
        %s483 = smul.addr %s464, 4
        %s484 = scalar_lea.vmem [#allocation3], %s483
        %485 = vst.msk [vmem:[%s484] sm:$0xf] %vm468, %v478
        %486 = vst.msk [vmem:[%s484 + $0x4] sm:$0xf] %vm468, %v480
        %487 = vrot.lane.b32.xlu0 %v471, 112
        %v488 = vpop.permute.xlu0 %487
        // While loop
        $region65: #{tpu_custom_call.1} parent=51 // loop_pre_header
          _
        $region66: #{tpu_custom_call.1} parent=51 // loop_header
          %s490 = sphi 0, %s492
          %p491 = scmp.ge.s32.totalorder %s490, %s29
          %v495 = vphi -1e+30, %v643
          %v496 = vphi -1e+30, %v644
          %v497 = vphi -1e+30, %v645
          %v498 = vphi -1e+30, %v646
          %v499 = vphi 0.0, %v687
          %v500 = vphi 0.0, %v688
          %v501 = vphi 0.0, %v689
          %v502 = vphi 0.0, %v690
          %v503 = vphi 0.0, %v793
          %v504 = vphi 0.0, %v794
          %v505 = vphi 0.0, %v795
          %v506 = vphi 0.0, %v796
        $region67: #{tpu_custom_call.1} parent=51 // loop_header_branch
          %494 = sbr.rel (%p491) target = $region71
        $region68: #{tpu_custom_call.1} parent=51 // loop_body
          %s507 = smul.u32 %s490, 16
          %s508 = sshra.s32 %s507, 3
          %s509 = sand.u32 %s507, 7
          %s510 = smul.addr %s508, 4
          %s511 = scalar_lea.vmem [#allocation2], %s510
          %v512 = vld [vmem:[%s511] sm:$0xf]
          %v513 = vld [vmem:[%s511 + $0x4] sm:$0xf]
          %516 = vrot.lane.b32.xlu0 %v512, 112
          %v517 = vpop.permute.xlu0 %516
          %518 = vrot.lane.b32.xlu0 %v513, 112
          %v519 = vpop.permute.xlu0 %518
          %s520 = smul.addr %s508, 4
          %s521 = scalar_lea.vmem [#allocation3], %s520
          %v522 = vld [vmem:[%s521] sm:$0xf]
          %v523 = vld [vmem:[%s521 + $0x4] sm:$0xf]
          %526 = vrot.lane.b32.xlu0 %v522, 112
          %v527 = vpop.permute.xlu0 %526
          %528 = vrot.lane.b32.xlu0 %v523, 112
          %v529 = vpop.permute.xlu0 %528
          %v530 = vunpack.c.l.b16 %v512
          %v531 = vunpack.c.l.b16 %v513
          %v532 = vpack.c.b16 %v531, %v530
          %vm533 = vcmask 130048
          %v535 = vsel %vm533, %v471, 0
          %v538 = vsel %vm533, %v532, 0
          %540 = vmatprep.subr.bf16.mxu0 0
          %541 = vmatpush1.bf16.xpose.msra.mxu0 0
          %542 = vmatprep.subr.bf16.mxu0 0
          %543 = vmatpush1.bf16.xpose.msra.mxu0 0
          %544 = vmatprep.subr.bf16.mxu0 0
          %545 = vmatpush1.bf16.xpose.msra.mxu0 0
          %546 = vmatprep.subr.bf16.mxu0 0
          %547 = vmatpush1.bf16.xpose.msra.mxu0 0
          %548 = vmatprep.subr.bf16.mxu0 0
          %549 = vmatpush1.bf16.xpose.msra.mxu0 0
          %550 = vmatprep.subr.bf16.mxu0 0
          %551 = vmatpush1.bf16.xpose.msra.mxu0 0
          %552 = vmatprep.subr.bf16.mxu0 0
          %553 = vmatpush1.bf16.xpose.msra.mxu0 0
          %554 = vmatprep.subr.bf16.mxu0 0
          %555 = vmatpush1.bf16.xpose.msra.mxu0 %v538
          %556 = vmatprep.subr.bf16.mxu0 0
          %557 = vmatpush2.bf16.xpose.msra.mxu0 0
          %558 = vmatprep.subr.bf16.mxu0 0
          %559 = vmatpush2.bf16.xpose.msra.mxu0 0
          %560 = vmatprep.subr.bf16.mxu0 0
          %561 = vmatpush2.bf16.xpose.msra.mxu0 0
          %562 = vmatprep.subr.bf16.mxu0 0
          %563 = vmatpush2.bf16.xpose.msra.mxu0 0
          %564 = vmatprep.subr.bf16.mxu0 0
          %565 = vmatpush2.bf16.xpose.msra.mxu0 0
          %566 = vmatprep.subr.bf16.mxu0 0
          %567 = vmatpush2.bf16.xpose.msra.mxu0 0
          %568 = vmatprep.subr.bf16.mxu0 0
          %569 = vmatpush2.bf16.xpose.msra.mxu0 0
          %570 = vmatprep.subr.bf16.mxu0 0
          %571 = vmatpush2.bf16.xpose.msra.mxu0 0
          %572 = vmatprep.mubr.bf16.mxu0 0
          %573 = vmatmul.mubr.bf16.gmra.mxu0 %v535
          %v574 = vpop.f32.mrf.mxu0
          %v575 = vadd.f32 0.0, %v574
          %v576 = vpop.f32.mrf.mxu0
          %v577 = vpop.f32.mrf.mxu0
          %v578 = vadd.f32 0.0, %v577
          %v579 = vpop.f32.mrf.mxu0
          %580 = vdwg.mxu0
          %v581 = vunpack.c.l.b16 %v517
          %v582 = vunpack.c.l.b16 %v519
          %v583 = vpack.c.b16 %v582, %v581
          %v585 = vsel %vm533, %v488, 0
          %v588 = vsel %vm533, %v583, 0
          %590 = vmatprep.subr.bf16.mxu0 0
          %591 = vmatpush1.bf16.xpose.msra.mxu0 0
          %592 = vmatprep.subr.bf16.mxu0 0
          %593 = vmatpush1.bf16.xpose.msra.mxu0 0
          %594 = vmatprep.subr.bf16.mxu0 0
          %595 = vmatpush1.bf16.xpose.msra.mxu0 0
          %596 = vmatprep.subr.bf16.mxu0 0
          %597 = vmatpush1.bf16.xpose.msra.mxu0 0
          %598 = vmatprep.subr.bf16.mxu0 0
          %599 = vmatpush1.bf16.xpose.msra.mxu0 0
          %600 = vmatprep.subr.bf16.mxu0 0
          %601 = vmatpush1.bf16.xpose.msra.mxu0 0
          %602 = vmatprep.subr.bf16.mxu0 0
          %603 = vmatpush1.bf16.xpose.msra.mxu0 0
          %604 = vmatprep.subr.bf16.mxu0 0
          %605 = vmatpush1.bf16.xpose.msra.mxu0 %v588
          %606 = vmatprep.subr.bf16.mxu0 0
          %607 = vmatpush2.bf16.xpose.msra.mxu0 0
          %608 = vmatprep.subr.bf16.mxu0 0
          %609 = vmatpush2.bf16.xpose.msra.mxu0 0
          %610 = vmatprep.subr.bf16.mxu0 0
          %611 = vmatpush2.bf16.xpose.msra.mxu0 0
          %612 = vmatprep.subr.bf16.mxu0 0
          %613 = vmatpush2.bf16.xpose.msra.mxu0 0
          %614 = vmatprep.subr.bf16.mxu0 0
          %615 = vmatpush2.bf16.xpose.msra.mxu0 0
          %616 = vmatprep.subr.bf16.mxu0 0
          %617 = vmatpush2.bf16.xpose.msra.mxu0 0
          %618 = vmatprep.subr.bf16.mxu0 0
          %619 = vmatpush2.bf16.xpose.msra.mxu0 0
          %620 = vmatprep.subr.bf16.mxu0 0
          %621 = vmatpush2.bf16.xpose.msra.mxu0 0
          %622 = vmatprep.mubr.bf16.mxu0 0
          %623 = vmatmul.mubr.bf16.gmra.mxu0 %v585
          %v624 = vpop.f32.mrf.mxu0
          %v625 = vadd.f32 0.0, %v624
          %v626 = vpop.f32.mrf.mxu0
          %v627 = vpop.f32.mrf.mxu0
          %v628 = vadd.f32 0.0, %v627
          %v629 = vpop.f32.mrf.mxu0
          %630 = vdwg.mxu0
          %v631 = vsel %vm533, %v575, -inf
          %632 = vmax.xlane.f32.xlu0 %v631
          %v633 = vpop.xlane.xlu0 %632
          %v634 = vsel %vm533, %v578, -inf
          %635 = vmax.xlane.f32.xlu0 %v634
          %v636 = vpop.xlane.xlu0 %635
          %v637 = vsel %vm533, %v625, -inf
          %638 = vmax.xlane.f32.xlu0 %v637
          %v639 = vpop.xlane.xlu0 %638
          %v640 = vsel %vm533, %v628, -inf
          %641 = vmax.xlane.f32.xlu0 %v640
          %v642 = vpop.xlane.xlu0 %641
          %v643 = vmax.f32 %v495, %v633
          %v644 = vmax.f32 %v496, %v636
          %v645 = vmax.f32 %v497, %v639
          %v646 = vmax.f32 %v498, %v642
          %v647 = vsub.f32 %v495, %v643
          %v648 = vsub.f32 %v496, %v644
          %v649 = vsub.f32 %v497, %v645
          %v650 = vsub.f32 %v498, %v646
          %v651 = vmul.f32 %v647, 1.442695
          %v652 = vpow.pop %v651
          %v653 = vmul.f32 %v648, 1.442695
          %v654 = vpow.pop %v653
          %v655 = vmul.f32 %v649, 1.442695
          %v656 = vpow.pop %v655
          %v657 = vmul.f32 %v650, 1.442695
          %v658 = vpow.pop %v657
          %v659 = vsub.f32 %v575, %v643
          %v660 = vsub.f32 %v578, %v644
          %v661 = vsub.f32 %v625, %v645
          %v662 = vsub.f32 %v628, %v646
          %v663 = vmul.f32 %v659, 1.442695
          %v664 = vpow.pop %v663
          %v665 = vmul.f32 %v660, 1.442695
          %v666 = vpow.pop %v665
          %v667 = vmul.f32 %v661, 1.442695
          %v668 = vpow.pop %v667
          %v669 = vmul.f32 %v662, 1.442695
          %v670 = vpow.pop %v669
          %v671 = vmul.f32 %v652, %v499
          %v672 = vmul.f32 %v654, %v500
          %v673 = vmul.f32 %v656, %v501
          %v674 = vmul.f32 %v658, %v502
          %v675 = vsel %vm533, %v664, 0.0
          %676 = vadd.xlane.f32.xlu0 %v675
          %v677 = vpop.xlane.xlu0 %676
          %v678 = vsel %vm533, %v666, 0.0
          %679 = vadd.xlane.f32.xlu0 %v678
          %v680 = vpop.xlane.xlu0 %679
          %v681 = vsel %vm533, %v668, 0.0
          %682 = vadd.xlane.f32.xlu0 %v681
          %v683 = vpop.xlane.xlu0 %682
          %v684 = vsel %vm533, %v670, 0.0
          %685 = vadd.xlane.f32.xlu0 %v684
          %v686 = vpop.xlane.xlu0 %685
          %v687 = vadd.f32 %v671, %v677
          %v688 = vadd.f32 %v672, %v680
          %v689 = vadd.f32 %v673, %v683
          %v690 = vadd.f32 %v674, %v686
          %v691 = vmul.f32 %v652, %v503
          %v692 = vmul.f32 %v654, %v504
          %v693 = vmul.f32 %v656, %v505
          %v694 = vmul.f32 %v658, %v506
          %v695 = vpack.c.bf16 %v666, %v664
          %v696 = vpack.c.bf16 %v670, %v668
          %v697 = vunpack.c.l.b16 %v522
          %v698 = vunpack.c.l.b16 %v523
          %v699 = vpack.c.b16 %v698, %v697
          %v702 = vsel %vm533, %v695, 0
          %704 = vmatprep.subr.bf16.mxu0 0
          %705 = vmatpush1.bf16.msra.mxu0 0
          %706 = vmatprep.subr.bf16.mxu0 0
          %707 = vmatpush1.bf16.msra.mxu0 0
          %708 = vmatprep.subr.bf16.mxu0 0
          %709 = vmatpush1.bf16.msra.mxu0 0
          %710 = vmatprep.subr.bf16.mxu0 0
          %711 = vmatpush1.bf16.msra.mxu0 0
          %712 = vmatprep.subr.bf16.mxu0 0
          %713 = vmatpush1.bf16.msra.mxu0 0
          %714 = vmatprep.subr.bf16.mxu0 0
          %715 = vmatpush1.bf16.msra.mxu0 0
          %716 = vmatprep.subr.bf16.mxu0 0
          %717 = vmatpush1.bf16.msra.mxu0 0
          %718 = vmatprep.subr.bf16.mxu0 0
          %719 = vmatpush1.bf16.msra.mxu0 %v699
          %720 = vmatprep.subr.bf16.mxu0 0
          %721 = vmatpush2.bf16.msra.mxu0 0
          %722 = vmatprep.subr.bf16.mxu0 0
          %723 = vmatpush2.bf16.msra.mxu0 0
          %724 = vmatprep.subr.bf16.mxu0 0
          %725 = vmatpush2.bf16.msra.mxu0 0
          %726 = vmatprep.subr.bf16.mxu0 0
          %727 = vmatpush2.bf16.msra.mxu0 0
          %728 = vmatprep.subr.bf16.mxu0 0
          %729 = vmatpush2.bf16.msra.mxu0 0
          %730 = vmatprep.subr.bf16.mxu0 0
          %731 = vmatpush2.bf16.msra.mxu0 0
          %732 = vmatprep.subr.bf16.mxu0 0
          %733 = vmatpush2.bf16.msra.mxu0 0
          %734 = vmatprep.subr.bf16.mxu0 0
          %735 = vmatpush2.bf16.msra.mxu0 0
          %736 = vmatprep.mubr.bf16.mxu0 0
          %737 = vmatmul.mubr.bf16.gmra.mxu0 %v702
          %v738 = vpop.f32.mrf.mxu0
          %v739 = vadd.f32 0.0, %v738
          %v740 = vpop.f32.mrf.mxu0
          %v741 = vpop.f32.mrf.mxu0
          %v742 = vadd.f32 0.0, %v741
          %v743 = vpop.f32.mrf.mxu0
          %744 = vdwg.mxu0
          %v745 = vunpack.c.l.b16 %v527
          %v746 = vunpack.c.l.b16 %v529
          %v747 = vpack.c.b16 %v746, %v745
          %v750 = vsel %vm533, %v696, 0
          %752 = vmatprep.subr.bf16.mxu0 0
          %753 = vmatpush1.bf16.msra.mxu0 0
          %754 = vmatprep.subr.bf16.mxu0 0
          %755 = vmatpush1.bf16.msra.mxu0 0
          %756 = vmatprep.subr.bf16.mxu0 0
          %757 = vmatpush1.bf16.msra.mxu0 0
          %758 = vmatprep.subr.bf16.mxu0 0
          %759 = vmatpush1.bf16.msra.mxu0 0
          %760 = vmatprep.subr.bf16.mxu0 0
          %761 = vmatpush1.bf16.msra.mxu0 0
          %762 = vmatprep.subr.bf16.mxu0 0
          %763 = vmatpush1.bf16.msra.mxu0 0
          %764 = vmatprep.subr.bf16.mxu0 0
          %765 = vmatpush1.bf16.msra.mxu0 0
          %766 = vmatprep.subr.bf16.mxu0 0
          %767 = vmatpush1.bf16.msra.mxu0 %v747
          %768 = vmatprep.subr.bf16.mxu0 0
          %769 = vmatpush2.bf16.msra.mxu0 0
          %770 = vmatprep.subr.bf16.mxu0 0
          %771 = vmatpush2.bf16.msra.mxu0 0
          %772 = vmatprep.subr.bf16.mxu0 0
          %773 = vmatpush2.bf16.msra.mxu0 0
          %774 = vmatprep.subr.bf16.mxu0 0
          %775 = vmatpush2.bf16.msra.mxu0 0
          %776 = vmatprep.subr.bf16.mxu0 0
          %777 = vmatpush2.bf16.msra.mxu0 0
          %778 = vmatprep.subr.bf16.mxu0 0
          %779 = vmatpush2.bf16.msra.mxu0 0
          %780 = vmatprep.subr.bf16.mxu0 0
          %781 = vmatpush2.bf16.msra.mxu0 0
          %782 = vmatprep.subr.bf16.mxu0 0
          %783 = vmatpush2.bf16.msra.mxu0 0
          %784 = vmatprep.mubr.bf16.mxu0 0
          %785 = vmatmul.mubr.bf16.gmra.mxu0 %v750
          %v786 = vpop.f32.mrf.mxu0
          %v787 = vadd.f32 0.0, %v786
          %v788 = vpop.f32.mrf.mxu0
          %v789 = vpop.f32.mrf.mxu0
          %v790 = vadd.f32 0.0, %v789
          %v791 = vpop.f32.mrf.mxu0
          %792 = vdwg.mxu0
          %v793 = vadd.f32 %v691, %v739
          %v794 = vadd.f32 %v692, %v742
          %v795 = vadd.f32 %v693, %v787
          %v796 = vadd.f32 %v694, %v790
        $region69: #{tpu_custom_call.1} parent=51 // loop_footer
          %s492 = sadd.s32 %s490, 1
        $region70: #{tpu_custom_call.1} parent=51 // loop_footer_branch
          %489 = sbr.rel target = $region66
        $region71: #{tpu_custom_call.1} parent=51 // loop_exit
          _
        %v797 = vlaneseq
        %v798 = vshrl.u32 %v797, 7
        %v799 = vadd.s32 %v798, 8
        %v800 = vlaneseq
        %v801 = vand.u32 %v800, 127
        %vm802 = vcmp.ge.s32.totalorder %v798, %v801
        %vm803 = vcmp.ge.s32.totalorder %v799, %v801
        %v804 = vld [vmem:[%s467] sm:$0xf]
        %v805 = vld [vmem:[%s467 + $0x4] sm:$0xf]
        %808 = vrot.lane.b32.xlu0 %v804, 112
        %v809 = vpop.permute.xlu0 %808
        %810 = vrot.lane.b32.xlu0 %v805, 112
        %v811 = vpop.permute.xlu0 %810
        %v812 = vld [vmem:[%s484] sm:$0xf]
        %v813 = vld [vmem:[%s484 + $0x4] sm:$0xf]
        %816 = vrot.lane.b32.xlu0 %v812, 112
        %v817 = vpop.permute.xlu0 %816
        %818 = vrot.lane.b32.xlu0 %v813, 112
        %v819 = vpop.permute.xlu0 %818
        %v820 = vunpack.c.l.b16 %v804
        %v821 = vunpack.c.l.b16 %v805
        %v822 = vpack.c.b16 %v821, %v820
        %vm823 = vcmask 130048
        %v825 = vsel %vm823, %v471, 0
        %v828 = vsel %vm823, %v822, 0
        %830 = vmatprep.subr.bf16.mxu0 0
        %831 = vmatpush1.bf16.xpose.msra.mxu0 0
        %832 = vmatprep.subr.bf16.mxu0 0
        %833 = vmatpush1.bf16.xpose.msra.mxu0 0
        %834 = vmatprep.subr.bf16.mxu0 0
        %835 = vmatpush1.bf16.xpose.msra.mxu0 0
        %836 = vmatprep.subr.bf16.mxu0 0
        %837 = vmatpush1.bf16.xpose.msra.mxu0 0
        %838 = vmatprep.subr.bf16.mxu0 0
        %839 = vmatpush1.bf16.xpose.msra.mxu0 0
        %840 = vmatprep.subr.bf16.mxu0 0
        %841 = vmatpush1.bf16.xpose.msra.mxu0 0
        %842 = vmatprep.subr.bf16.mxu0 0
        %843 = vmatpush1.bf16.xpose.msra.mxu0 0
        %844 = vmatprep.subr.bf16.mxu0 0
        %845 = vmatpush1.bf16.xpose.msra.mxu0 %v828
        %846 = vmatprep.subr.bf16.mxu0 0
        %847 = vmatpush2.bf16.xpose.msra.mxu0 0
        %848 = vmatprep.subr.bf16.mxu0 0
        %849 = vmatpush2.bf16.xpose.msra.mxu0 0
        %850 = vmatprep.subr.bf16.mxu0 0
        %851 = vmatpush2.bf16.xpose.msra.mxu0 0
        %852 = vmatprep.subr.bf16.mxu0 0
        %853 = vmatpush2.bf16.xpose.msra.mxu0 0
        %854 = vmatprep.subr.bf16.mxu0 0
        %855 = vmatpush2.bf16.xpose.msra.mxu0 0
        %856 = vmatprep.subr.bf16.mxu0 0
        %857 = vmatpush2.bf16.xpose.msra.mxu0 0
        %858 = vmatprep.subr.bf16.mxu0 0
        %859 = vmatpush2.bf16.xpose.msra.mxu0 0
        %860 = vmatprep.subr.bf16.mxu0 0
        %861 = vmatpush2.bf16.xpose.msra.mxu0 0
        %862 = vmatprep.mubr.bf16.mxu0 0
        %863 = vmatmul.mubr.bf16.gmra.mxu0 %v825
        %v864 = vpop.f32.mrf.mxu0
        %v865 = vadd.f32 0.0, %v864
        %v866 = vpop.f32.mrf.mxu0
        %v867 = vpop.f32.mrf.mxu0
        %v868 = vadd.f32 0.0, %v867
        %v869 = vpop.f32.mrf.mxu0
        %870 = vdwg.mxu0
        %v871 = vunpack.c.l.b16 %v809
        %v872 = vunpack.c.l.b16 %v811
        %v873 = vpack.c.b16 %v872, %v871
        %v875 = vsel %vm823, %v488, 0
        %v878 = vsel %vm823, %v873, 0
        %880 = vmatprep.subr.bf16.mxu0 0
        %881 = vmatpush1.bf16.xpose.msra.mxu0 0
        %882 = vmatprep.subr.bf16.mxu0 0
        %883 = vmatpush1.bf16.xpose.msra.mxu0 0
        %884 = vmatprep.subr.bf16.mxu0 0
        %885 = vmatpush1.bf16.xpose.msra.mxu0 0
        %886 = vmatprep.subr.bf16.mxu0 0
        %887 = vmatpush1.bf16.xpose.msra.mxu0 0
        %888 = vmatprep.subr.bf16.mxu0 0
        %889 = vmatpush1.bf16.xpose.msra.mxu0 0
        %890 = vmatprep.subr.bf16.mxu0 0
        %891 = vmatpush1.bf16.xpose.msra.mxu0 0
        %892 = vmatprep.subr.bf16.mxu0 0
        %893 = vmatpush1.bf16.xpose.msra.mxu0 0
        %894 = vmatprep.subr.bf16.mxu0 0
        %895 = vmatpush1.bf16.xpose.msra.mxu0 %v878
        %896 = vmatprep.subr.bf16.mxu0 0
        %897 = vmatpush2.bf16.xpose.msra.mxu0 0
        %898 = vmatprep.subr.bf16.mxu0 0
        %899 = vmatpush2.bf16.xpose.msra.mxu0 0
        %900 = vmatprep.subr.bf16.mxu0 0
        %901 = vmatpush2.bf16.xpose.msra.mxu0 0
        %902 = vmatprep.subr.bf16.mxu0 0
        %903 = vmatpush2.bf16.xpose.msra.mxu0 0
        %904 = vmatprep.subr.bf16.mxu0 0
        %905 = vmatpush2.bf16.xpose.msra.mxu0 0
        %906 = vmatprep.subr.bf16.mxu0 0
        %907 = vmatpush2.bf16.xpose.msra.mxu0 0
        %908 = vmatprep.subr.bf16.mxu0 0
        %909 = vmatpush2.bf16.xpose.msra.mxu0 0
        %910 = vmatprep.subr.bf16.mxu0 0
        %911 = vmatpush2.bf16.xpose.msra.mxu0 0
        %912 = vmatprep.mubr.bf16.mxu0 0
        %913 = vmatmul.mubr.bf16.gmra.mxu0 %v875
        %v914 = vpop.f32.mrf.mxu0
        %v915 = vadd.f32 0.0, %v914
        %v916 = vpop.f32.mrf.mxu0
        %v917 = vpop.f32.mrf.mxu0
        %v918 = vadd.f32 0.0, %v917
        %v919 = vpop.f32.mrf.mxu0
        %920 = vdwg.mxu0
        %v921 = vsel %vm802, 1, 0
        %v922 = vsel %vm803, 1, 0
        %vm923 = vcmp.eq.s32.totalorder %v921, 1
        %vm924 = vcmp.eq.s32.totalorder %v922, 1
        %v925 = vsel %vm923, %v865, -1e+30
        %v926 = vsel %vm924, %v868, -1e+30
        %v927 = vsel %vm923, %v915, -1e+30
        %v928 = vsel %vm924, %v918, -1e+30
        %v929 = vsel %vm823, %v925, -inf
        %930 = vmax.xlane.f32.xlu0 %v929
        %v931 = vpop.xlane.xlu0 %930
        %v932 = vsel %vm823, %v926, -inf
        %933 = vmax.xlane.f32.xlu0 %v932
        %v934 = vpop.xlane.xlu0 %933
        %v935 = vsel %vm823, %v927, -inf
        %936 = vmax.xlane.f32.xlu0 %v935
        %v937 = vpop.xlane.xlu0 %936
        %v938 = vsel %vm823, %v928, -inf
        %939 = vmax.xlane.f32.xlu0 %v938
        %v940 = vpop.xlane.xlu0 %939
        %v941 = vmax.f32 %v495, %v931
        %v942 = vmax.f32 %v496, %v934
        %v943 = vmax.f32 %v497, %v937
        %v944 = vmax.f32 %v498, %v940
        %v945 = vsub.f32 %v495, %v941
        %v946 = vsub.f32 %v496, %v942
        %v947 = vsub.f32 %v497, %v943
        %v948 = vsub.f32 %v498, %v944
        %v949 = vmul.f32 %v945, 1.442695
        %v950 = vpow.pop %v949
        %v951 = vmul.f32 %v946, 1.442695
        %v952 = vpow.pop %v951
        %v953 = vmul.f32 %v947, 1.442695
        %v954 = vpow.pop %v953
        %v955 = vmul.f32 %v948, 1.442695
        %v956 = vpow.pop %v955
        %v957 = vsub.f32 %v925, %v941
        %v958 = vsub.f32 %v926, %v942
        %v959 = vsub.f32 %v927, %v943
        %v960 = vsub.f32 %v928, %v944
        %v961 = vmul.f32 %v957, 1.442695
        %v962 = vpow.pop %v961
        %v963 = vmul.f32 %v958, 1.442695
        %v964 = vpow.pop %v963
        %v965 = vmul.f32 %v959, 1.442695
        %v966 = vpow.pop %v965
        %v967 = vmul.f32 %v960, 1.442695
        %v968 = vpow.pop %v967
        %v969 = vmul.f32 %v950, %v499
        %v970 = vmul.f32 %v952, %v500
        %v971 = vmul.f32 %v954, %v501
        %v972 = vmul.f32 %v956, %v502
        %v973 = vsel %vm823, %v962, 0.0
        %974 = vadd.xlane.f32.xlu0 %v973
        %v975 = vpop.xlane.xlu0 %974
        %v976 = vsel %vm823, %v964, 0.0
        %977 = vadd.xlane.f32.xlu0 %v976
        %v978 = vpop.xlane.xlu0 %977
        %v979 = vsel %vm823, %v966, 0.0
        %980 = vadd.xlane.f32.xlu0 %v979
        %v981 = vpop.xlane.xlu0 %980
        %v982 = vsel %vm823, %v968, 0.0
        %983 = vadd.xlane.f32.xlu0 %v982
        %v984 = vpop.xlane.xlu0 %983
        %v985 = vadd.f32 %v969, %v975
        %v986 = vadd.f32 %v970, %v978
        %v987 = vadd.f32 %v971, %v981
        %v988 = vadd.f32 %v972, %v984
        %v989 = vmul.f32 %v950, %v503
        %v990 = vmul.f32 %v952, %v504
        %v991 = vmul.f32 %v954, %v505
        %v992 = vmul.f32 %v956, %v506
        %v993 = vpack.c.bf16 %v964, %v962
        %v994 = vpack.c.bf16 %v968, %v966
        %v995 = vunpack.c.l.b16 %v812
        %v996 = vunpack.c.l.b16 %v813
        %v997 = vpack.c.b16 %v996, %v995
        %v1000 = vsel %vm823, %v993, 0
        %1002 = vmatprep.subr.bf16.mxu0 0
        %1003 = vmatpush1.bf16.msra.mxu0 0
        %1004 = vmatprep.subr.bf16.mxu0 0
        %1005 = vmatpush1.bf16.msra.mxu0 0
        %1006 = vmatprep.subr.bf16.mxu0 0
        %1007 = vmatpush1.bf16.msra.mxu0 0
        %1008 = vmatprep.subr.bf16.mxu0 0
        %1009 = vmatpush1.bf16.msra.mxu0 0
        %1010 = vmatprep.subr.bf16.mxu0 0
        %1011 = vmatpush1.bf16.msra.mxu0 0
        %1012 = vmatprep.subr.bf16.mxu0 0
        %1013 = vmatpush1.bf16.msra.mxu0 0
        %1014 = vmatprep.subr.bf16.mxu0 0
        %1015 = vmatpush1.bf16.msra.mxu0 0
        %1016 = vmatprep.subr.bf16.mxu0 0
        %1017 = vmatpush1.bf16.msra.mxu0 %v997
        %1018 = vmatprep.subr.bf16.mxu0 0
        %1019 = vmatpush2.bf16.msra.mxu0 0
        %1020 = vmatprep.subr.bf16.mxu0 0
        %1021 = vmatpush2.bf16.msra.mxu0 0
        %1022 = vmatprep.subr.bf16.mxu0 0
        %1023 = vmatpush2.bf16.msra.mxu0 0
        %1024 = vmatprep.subr.bf16.mxu0 0
        %1025 = vmatpush2.bf16.msra.mxu0 0
        %1026 = vmatprep.subr.bf16.mxu0 0
        %1027 = vmatpush2.bf16.msra.mxu0 0
        %1028 = vmatprep.subr.bf16.mxu0 0
        %1029 = vmatpush2.bf16.msra.mxu0 0
        %1030 = vmatprep.subr.bf16.mxu0 0
        %1031 = vmatpush2.bf16.msra.mxu0 0
        %1032 = vmatprep.subr.bf16.mxu0 0
        %1033 = vmatpush2.bf16.msra.mxu0 0
        %1034 = vmatprep.mubr.bf16.mxu0 0
        %1035 = vmatmul.mubr.bf16.gmra.mxu0 %v1000
        %v1036 = vpop.f32.mrf.mxu0
        %v1037 = vadd.f32 0.0, %v1036
        %v1038 = vpop.f32.mrf.mxu0
        %v1039 = vpop.f32.mrf.mxu0
        %v1040 = vadd.f32 0.0, %v1039
        %v1041 = vpop.f32.mrf.mxu0
        %1042 = vdwg.mxu0
        %v1043 = vunpack.c.l.b16 %v817
        %v1044 = vunpack.c.l.b16 %v819
        %v1045 = vpack.c.b16 %v1044, %v1043
        %v1048 = vsel %vm823, %v994, 0
        %1050 = vmatprep.subr.bf16.mxu0 0
        %1051 = vmatpush1.bf16.msra.mxu0 0
        %1052 = vmatprep.subr.bf16.mxu0 0
        %1053 = vmatpush1.bf16.msra.mxu0 0
        %1054 = vmatprep.subr.bf16.mxu0 0
        %1055 = vmatpush1.bf16.msra.mxu0 0
        %1056 = vmatprep.subr.bf16.mxu0 0
        %1057 = vmatpush1.bf16.msra.mxu0 0
        %1058 = vmatprep.subr.bf16.mxu0 0
        %1059 = vmatpush1.bf16.msra.mxu0 0
        %1060 = vmatprep.subr.bf16.mxu0 0
        %1061 = vmatpush1.bf16.msra.mxu0 0
        %1062 = vmatprep.subr.bf16.mxu0 0
        %1063 = vmatpush1.bf16.msra.mxu0 0
        %1064 = vmatprep.subr.bf16.mxu0 0
        %1065 = vmatpush1.bf16.msra.mxu0 %v1045
        %1066 = vmatprep.subr.bf16.mxu0 0
        %1067 = vmatpush2.bf16.msra.mxu0 0
        %1068 = vmatprep.subr.bf16.mxu0 0
        %1069 = vmatpush2.bf16.msra.mxu0 0
        %1070 = vmatprep.subr.bf16.mxu0 0
        %1071 = vmatpush2.bf16.msra.mxu0 0
        %1072 = vmatprep.subr.bf16.mxu0 0
        %1073 = vmatpush2.bf16.msra.mxu0 0
        %1074 = vmatprep.subr.bf16.mxu0 0
        %1075 = vmatpush2.bf16.msra.mxu0 0
        %1076 = vmatprep.subr.bf16.mxu0 0
        %1077 = vmatpush2.bf16.msra.mxu0 0
        %1078 = vmatprep.subr.bf16.mxu0 0
        %1079 = vmatpush2.bf16.msra.mxu0 0
        %1080 = vmatprep.subr.bf16.mxu0 0
        %1081 = vmatpush2.bf16.msra.mxu0 0
        %1082 = vmatprep.mubr.bf16.mxu0 0
        %1083 = vmatmul.mubr.bf16.gmra.mxu0 %v1048
        %v1084 = vpop.f32.mrf.mxu0
        %v1085 = vadd.f32 0.0, %v1084
        %v1086 = vpop.f32.mrf.mxu0
        %v1087 = vpop.f32.mrf.mxu0
        %v1088 = vadd.f32 0.0, %v1087
        %v1089 = vpop.f32.mrf.mxu0
        %1090 = vdwg.mxu0
        %v1091 = vadd.f32 %v989, %v1037
        %v1092 = vadd.f32 %v990, %v1040
        %v1093 = vadd.f32 %v991, %v1085
        %v1094 = vadd.f32 %v992, %v1088
        %v1095 = vrcp.pop %v985
        %v1096 = vrcp.pop %v986
        %v1097 = vrcp.pop %v987
        %v1098 = vrcp.pop %v988
        %v1099 = vmul.f32 %v1091, %v1095
        %v1100 = vmul.f32 %v1092, %v1096
        %v1101 = vmul.f32 %v1093, %v1097
        %v1102 = vmul.f32 %v1094, %v1098
        %v1103 = vld [vmem:[%s7] sm:$0x1]
        %v1104 = vld [vmem:[%s7 + $0x1] sm:$0x1]
        %v1105 = vld [vmem:[%s7 + $0x2] sm:$0x1]
        %v1106 = vld [vmem:[%s7 + $0x3] sm:$0x1]
        %v1107 = vld [vmem:[%s7 + $0x4] sm:$0x1]
        %v1108 = vld [vmem:[%s7 + $0x5] sm:$0x1]
        %v1109 = vpack.c.bf16 %v1100, %v1099
        %v1111 = vunpack.c.l.b16 %v1109
        %v1112 = vunpack.c.h.b16 %v1109
        %v1113 = vpack.c.b16 %v1111, %v1111
        %v1114 = vpack.c.b16 %v1112, %v1112
        %vm1117 = vcmask 125952
        %1118 = vst.msk [vmem:[#allocation4] sm:$0xf] %vm1117, %v1113
        %1119 = vst.msk [vmem:[#allocation4 + $0x4] sm:$0xf] %vm1117, %v1114
        %v1120 = vpack.c.bf16 %v1102, %v1101
        %v1122 = vunpack.c.l.b16 %v1120
        %v1123 = vunpack.c.h.b16 %v1120
        %v1124 = vpack.c.b16 %v1122, %v1122
        %v1125 = vpack.c.b16 %v1123, %v1123
        %1126 = vrot.lane.b32.xlu0 %v1124, 16
        %v1127 = vpop.permute.xlu0 %1126
        %1128 = vrot.lane.b32.xlu0 %v1125, 16
        %v1129 = vpop.permute.xlu0 %1128
        %vm1132 = vcmask 257152
        %1133 = vst.msk [vmem:[#allocation4] sm:$0xf] %vm1132, %v1127
        %1134 = vst.msk [vmem:[#allocation4 + $0x4] sm:$0xf] %vm1132, %v1129
        %v1135 = vld [vmem:[#allocation4] sm:$0xf]
        %v1136 = vld [vmem:[#allocation4 + $0x4] sm:$0xf]
        %v1137 = vld [vmem:[#allocation5] sm:$0xf]
        %v1138 = vld [vmem:[#allocation5 + $0x4] sm:$0xf]
        %v1139 = vld [vmem:[#allocation5 + $0x8] sm:$0xf]
        %v1140 = vld [vmem:[#allocation5 + $0xc] sm:$0xf]
        %v1141 = vlaneseq
        %v1142 = vshrl.u32 %v1141, 7
        %v1143 = vsub.s32 0, %v1142
        %v1144 = vrot.slane %v1103, %v1143
        %v1147 = vunpack.c.l.b16 %v1135
        %v1148 = vunpack.c.l.b16 %v1136
        %v1149 = vpack.c.b16 %v1148, %v1147
        %v1154 = vunpack.c.l.b16 %v1137
        %v1155 = vunpack.c.l.b16 %v1138
        %v1156 = vunpack.c.l.b16 %v1139
        %v1157 = vunpack.c.l.b16 %v1140
        %v1158 = vpack.c.b16 %v1155, %v1154
        %v1159 = vpack.c.b16 %v1157, %v1156
        %v1163 = vsel %vm405, %v1149, 0
        %1165 = vmatprep.subr.bf16.mxu0 0
        %1166 = vmatpush1.bf16.msra.mxu0 0
        %1167 = vmatprep.subr.bf16.mxu0 0
        %1168 = vmatpush1.bf16.msra.mxu0 0
        %1169 = vmatprep.subr.bf16.mxu0 0
        %1170 = vmatpush1.bf16.msra.mxu0 0
        %1171 = vmatprep.subr.bf16.mxu0 0
        %1172 = vmatpush1.bf16.msra.mxu0 0
        %1173 = vmatprep.subr.bf16.mxu0 0
        %1174 = vmatpush1.bf16.msra.mxu0 0
        %1175 = vmatprep.subr.bf16.mxu0 0
        %1176 = vmatpush1.bf16.msra.mxu0 0
        %1177 = vmatprep.subr.bf16.mxu0 0
        %1178 = vmatpush1.bf16.msra.mxu0 %v1159
        %1179 = vmatprep.subr.bf16.mxu0 0
        %1180 = vmatpush1.bf16.msra.mxu0 %v1158
        %1181 = vmatprep.subr.bf16.mxu0 0
        %1182 = vmatpush2.bf16.msra.mxu0 0
        %1183 = vmatprep.subr.bf16.mxu0 0
        %1184 = vmatpush2.bf16.msra.mxu0 0
        %1185 = vmatprep.subr.bf16.mxu0 0
        %1186 = vmatpush2.bf16.msra.mxu0 0
        %1187 = vmatprep.subr.bf16.mxu0 0
        %1188 = vmatpush2.bf16.msra.mxu0 0
        %1189 = vmatprep.subr.bf16.mxu0 0
        %1190 = vmatpush2.bf16.msra.mxu0 0
        %1191 = vmatprep.subr.bf16.mxu0 0
        %1192 = vmatpush2.bf16.msra.mxu0 0
        %1193 = vmatprep.subr.bf16.mxu0 0
        %1194 = vmatpush2.bf16.msra.mxu0 0
        %1195 = vmatprep.subr.bf16.mxu0 0
        %1196 = vmatpush2.bf16.msra.mxu0 0
        %1197 = vmatprep.mubr.bf16.mxu0 0
        %1198 = vmatmul.mubr.bf16.gmra.mxu0 %v1163
        %v1199 = vpop.f32.mrf.mxu0
        %v1200 = vadd.f32 %v1144, %v1199
        %v1201 = vpop.f32.mrf.mxu0
        %v1202 = vpop.f32.mrf.mxu0
        %v1203 = vadd.f32 %v1144, %v1202
        %v1204 = vpop.f32.mrf.mxu0
        %1205 = vdwg.mxu0
        %v1206 = vadd.f32 %v378, %v1200
        %v1207 = vadd.f32 %v379, %v1203
        %v1208 = vsel %vm405, %v1206, 0.0
        %1209 = vadd.xlane.f32.xlu0 %v1208
        %v1210 = vpop.xlane.xlu0 %1209
        %v1211 = vsel %vm405, %v1207, 0.0
        %1212 = vadd.xlane.f32.xlu0 %v1211
        %v1213 = vpop.xlane.xlu0 %1212
        %v1214 = vrcp.pop 32.0
        %v1215 = vmul.f32 %v1210, %v1214
        %v1216 = vmul.f32 %v1213, %v1214
        %v1217 = vsub.f32 %v1206, %v1215
        %v1218 = vsub.f32 %v1207, %v1216
        %v1219 = vmul.f32 %v1217, %v1217
        %v1220 = vmul.f32 %v1218, %v1218
        %v1221 = vsel %vm405, %v1219, 0.0
        %1222 = vadd.xlane.f32.xlu0 %v1221
        %v1223 = vpop.xlane.xlu0 %1222
        %v1224 = vsel %vm405, %v1220, 0.0
        %1225 = vadd.xlane.f32.xlu0 %v1224
        %v1226 = vpop.xlane.xlu0 %1225
        %v1227 = vmul.f32 %v1223, %v1214
        %v1228 = vmul.f32 %v1226, %v1214
        %v1229 = vadd.f32 %v1227, 1e-05
        %v1230 = vadd.f32 %v1228, 1e-05
        %v1231 = vrsqrt.pop %v1229
        %v1232 = vrsqrt.pop %v1230
        %v1233 = vmul.f32 %v1217, %v1231
        %v1234 = vmul.f32 %v1218, %v1232
        %v1235 = vlaneseq
        %v1236 = vshrl.u32 %v1235, 7
        %v1237 = vsub.s32 0, %v1236
        %v1238 = vrot.slane %v1105, %v1237
        %v1239 = vmul.f32 %v1233, %v1238
        %v1240 = vmul.f32 %v1234, %v1238
        %v1241 = vlaneseq
        %v1242 = vshrl.u32 %v1241, 7
        %v1243 = vsub.s32 0, %v1242
        %v1244 = vrot.slane %v1106, %v1243
        %v1245 = vadd.f32 %v1239, %v1244
        %v1246 = vadd.f32 %v1240, %v1244
        %v1247 = vpack.c.bf16 %v1246, %v1245
        %v1248 = vld [vmem:[#allocation8] sm:$0xf]
        %v1249 = vld [vmem:[#allocation8 + $0x4] sm:$0xf]
        %v1250 = vld [vmem:[#allocation8 + $0x8] sm:$0xf]
        %v1251 = vld [vmem:[#allocation8 + $0xc] sm:$0xf]
        %v1252 = vld [vmem:[#allocation10] sm:$0x1]
        %v1254 = vlaneseq
        %v1255 = vshrl.u32 %v1254, 7
        %v1256 = vsub.s32 0, %v1255
        %v1257 = vrot.slane %v1252, %v1256
        %v1263 = vunpack.c.l.b16 %v1248
        %v1264 = vunpack.c.l.b16 %v1249
        %v1265 = vunpack.c.l.b16 %v1250
        %v1266 = vunpack.c.l.b16 %v1251
        %v1267 = vpack.c.b16 %v1264, %v1263
        %v1268 = vpack.c.b16 %v1266, %v1265
        %v1272 = vsel %vm405, %v1247, 0
        %1274 = vmatprep.subr.bf16.mxu0 0
        %1275 = vmatpush1.bf16.msra.mxu0 0
        %1276 = vmatprep.subr.bf16.mxu0 0
        %1277 = vmatpush1.bf16.msra.mxu0 0
        %1278 = vmatprep.subr.bf16.mxu0 0
        %1279 = vmatpush1.bf16.msra.mxu0 0
        %1280 = vmatprep.subr.bf16.mxu0 0
        %1281 = vmatpush1.bf16.msra.mxu0 0
        %1282 = vmatprep.subr.bf16.mxu0 0
        %1283 = vmatpush1.bf16.msra.mxu0 0
        %1284 = vmatprep.subr.bf16.mxu0 0
        %1285 = vmatpush1.bf16.msra.mxu0 0
        %1286 = vmatprep.subr.bf16.mxu0 0
        %1287 = vmatpush1.bf16.msra.mxu0 %v1268
        %1288 = vmatprep.subr.bf16.mxu0 0
        %1289 = vmatpush1.bf16.msra.mxu0 %v1267
        %1290 = vmatprep.subr.bf16.mxu0 0
        %1291 = vmatpush2.bf16.msra.mxu0 0
        %1292 = vmatprep.subr.bf16.mxu0 0
        %1293 = vmatpush2.bf16.msra.mxu0 0
        %1294 = vmatprep.subr.bf16.mxu0 0
        %1295 = vmatpush2.bf16.msra.mxu0 0
        %1296 = vmatprep.subr.bf16.mxu0 0
        %1297 = vmatpush2.bf16.msra.mxu0 0
        %1298 = vmatprep.subr.bf16.mxu0 0
        %1299 = vmatpush2.bf16.msra.mxu0 0
        %1300 = vmatprep.subr.bf16.mxu0 0
        %1301 = vmatpush2.bf16.msra.mxu0 0
        %1302 = vmatprep.subr.bf16.mxu0 0
        %1303 = vmatpush2.bf16.msra.mxu0 0
        %1304 = vmatprep.subr.bf16.mxu0 0
        %1305 = vmatpush2.bf16.msra.mxu0 0
        %1306 = vmatprep.mubr.bf16.mxu0 0
        %1307 = vmatmul.mubr.bf16.gmra.mxu0 %v1272
        %v1308 = vpop.f32.mrf.mxu0
        %v1309 = vadd.f32 %v1257, %v1308
        %v1310 = vpop.f32.mrf.mxu0
        %v1311 = vpop.f32.mrf.mxu0
        %v1312 = vadd.f32 %v1257, %v1311
        %v1313 = vpop.f32.mrf.mxu0
        %1314 = vdwg.mxu0
        %v1315 = vmul.f32 %v1309, %v1309
        %v1316 = vmul.f32 %v1312, %v1312
        %v1317 = vmul.f32 %v1309, %v1315
        %v1318 = vmul.f32 %v1312, %v1316
        %v1319 = vmul.f32 %v1317, 0.044715
        %v1320 = vmul.f32 %v1318, 0.044715
        %v1321 = vadd.f32 %v1309, %v1319
        %v1322 = vadd.f32 %v1312, %v1320
        %v1323 = vmul.f32 %v1321, 0.7978846
        %v1324 = vmul.f32 %v1322, 0.7978846
        %v1325 = vtanh.pop %v1323
        %v1326 = vtanh.pop %v1324
        %v1327 = vadd.f32 %v1325, 1.0
        %v1328 = vadd.f32 %v1326, 1.0
        %v1329 = vmul.f32 %v1327, 0.5
        %v1330 = vmul.f32 %v1328, 0.5
        %v1331 = vmul.f32 %v1309, %v1329
        %v1332 = vmul.f32 %v1312, %v1330
        %v1333 = vpack.c.bf16 %v1332, %v1331
        %v1334 = vld [vmem:[%s6] sm:$0xf]
        %v1335 = vld [vmem:[%s6 + $0x4] sm:$0xf]
        %v1336 = vld [vmem:[%s6 + $0x8] sm:$0xf]
        %v1337 = vld [vmem:[%s6 + $0xc] sm:$0xf]
        %v1338 = vld [vmem:[%s6 + $0x10] sm:$0xf]
        %v1339 = vld [vmem:[%s6 + $0x14] sm:$0xf]
        %v1340 = vld [vmem:[%s6 + $0x18] sm:$0xf]
        %v1341 = vld [vmem:[%s6 + $0x1c] sm:$0xf]
        %v1342 = vld [vmem:[%s6 + $0x20] sm:$0xf]
        %v1343 = vld [vmem:[%s6 + $0x24] sm:$0xf]
        %v1344 = vld [vmem:[%s6 + $0x28] sm:$0xf]
        %v1345 = vld [vmem:[%s6 + $0x2c] sm:$0xf]
        %v1346 = vld [vmem:[%s6 + $0x30] sm:$0xf]
        %v1347 = vld [vmem:[%s6 + $0x34] sm:$0xf]
        %v1348 = vld [vmem:[%s6 + $0x38] sm:$0xf]
        %v1349 = vld [vmem:[%s6 + $0x3c] sm:$0xf]
        %v1350 = vlaneseq
        %v1351 = vshrl.u32 %v1350, 7
        %v1352 = vsub.s32 0, %v1351
        %v1353 = vrot.slane %v1104, %v1352
        %v1370 = vunpack.c.l.b16 %v1334
        %v1371 = vunpack.c.l.b16 %v1335
        %v1372 = vunpack.c.l.b16 %v1336
        %v1373 = vunpack.c.l.b16 %v1337
        %v1374 = vunpack.c.l.b16 %v1338
        %v1375 = vunpack.c.l.b16 %v1339
        %v1376 = vunpack.c.l.b16 %v1340
        %v1377 = vunpack.c.l.b16 %v1341
        %v1378 = vunpack.c.l.b16 %v1342
        %v1379 = vunpack.c.l.b16 %v1343
        %v1380 = vunpack.c.l.b16 %v1344
        %v1381 = vunpack.c.l.b16 %v1345
        %v1382 = vunpack.c.l.b16 %v1346
        %v1383 = vunpack.c.l.b16 %v1347
        %v1384 = vunpack.c.l.b16 %v1348
        %v1385 = vunpack.c.l.b16 %v1349
        %v1386 = vpack.c.b16 %v1371, %v1370
        %v1387 = vpack.c.b16 %v1373, %v1372
        %v1388 = vpack.c.b16 %v1375, %v1374
        %v1389 = vpack.c.b16 %v1377, %v1376
        %v1390 = vpack.c.b16 %v1379, %v1378
        %v1391 = vpack.c.b16 %v1381, %v1380
        %v1392 = vpack.c.b16 %v1383, %v1382
        %v1393 = vpack.c.b16 %v1385, %v1384
        %1402 = vmatprep.subr.bf16.mxu0 0
        %1403 = vmatpush1.bf16.msra.mxu0 %v1393
        %1404 = vmatprep.subr.bf16.mxu0 0
        %1405 = vmatpush1.bf16.msra.mxu0 %v1392
        %1406 = vmatprep.subr.bf16.mxu0 0
        %1407 = vmatpush1.bf16.msra.mxu0 %v1391
        %1408 = vmatprep.subr.bf16.mxu0 0
        %1409 = vmatpush1.bf16.msra.mxu0 %v1390
        %1410 = vmatprep.subr.bf16.mxu0 0
        %1411 = vmatpush1.bf16.msra.mxu0 %v1389
        %1412 = vmatprep.subr.bf16.mxu0 0
        %1413 = vmatpush1.bf16.msra.mxu0 %v1388
        %1414 = vmatprep.subr.bf16.mxu0 0
        %1415 = vmatpush1.bf16.msra.mxu0 %v1387
        %1416 = vmatprep.subr.bf16.mxu0 0
        %1417 = vmatpush1.bf16.msra.mxu0 %v1386
        %1418 = vmatprep.subr.bf16.mxu0 0
        %1419 = vmatpush2.bf16.msra.mxu0 0
        %1420 = vmatprep.subr.bf16.mxu0 0
        %1421 = vmatpush2.bf16.msra.mxu0 0
        %1422 = vmatprep.subr.bf16.mxu0 0
        %1423 = vmatpush2.bf16.msra.mxu0 0
        %1424 = vmatprep.subr.bf16.mxu0 0
        %1425 = vmatpush2.bf16.msra.mxu0 0
        %1426 = vmatprep.subr.bf16.mxu0 0
        %1427 = vmatpush2.bf16.msra.mxu0 0
        %1428 = vmatprep.subr.bf16.mxu0 0
        %1429 = vmatpush2.bf16.msra.mxu0 0
        %1430 = vmatprep.subr.bf16.mxu0 0
        %1431 = vmatpush2.bf16.msra.mxu0 0
        %1432 = vmatprep.subr.bf16.mxu0 0
        %1433 = vmatpush2.bf16.msra.mxu0 0
        %1434 = vmatprep.mubr.bf16.mxu0 0
        %1435 = vmatmul.mubr.bf16.gmra.mxu0 %v1333
        %v1436 = vpop.f32.mrf.mxu0
        %v1437 = vadd.f32 %v1353, %v1436
        %v1438 = vpop.f32.mrf.mxu0
        %v1439 = vpop.f32.mrf.mxu0
        %v1440 = vadd.f32 %v1353, %v1439
        %v1441 = vpop.f32.mrf.mxu0
        %1442 = vdwg.mxu0
        %v1443 = vadd.f32 %v1245, %v1437
        %v1444 = vadd.f32 %v1246, %v1440
        %v1445 = vsel %vm405, %v1443, 0.0
        %1446 = vadd.xlane.f32.xlu0 %v1445
        %v1447 = vpop.xlane.xlu0 %1446
        %v1448 = vsel %vm405, %v1444, 0.0
        %1449 = vadd.xlane.f32.xlu0 %v1448
        %v1450 = vpop.xlane.xlu0 %1449
        %v1451 = vmul.f32 %v1447, %v1214
        %v1452 = vmul.f32 %v1450, %v1214
        %v1453 = vsub.f32 %v1443, %v1451
        %v1454 = vsub.f32 %v1444, %v1452
        %v1455 = vmul.f32 %v1453, %v1453
        %v1456 = vmul.f32 %v1454, %v1454
        %v1457 = vsel %vm405, %v1455, 0.0
        %1458 = vadd.xlane.f32.xlu0 %v1457
        %v1459 = vpop.xlane.xlu0 %1458
        %v1460 = vsel %vm405, %v1456, 0.0
        %1461 = vadd.xlane.f32.xlu0 %v1460
        %v1462 = vpop.xlane.xlu0 %1461
        %v1463 = vmul.f32 %v1459, %v1214
        %v1464 = vmul.f32 %v1462, %v1214
        %v1465 = vadd.f32 %v1463, 1e-05
        %v1466 = vadd.f32 %v1464, 1e-05
        %v1467 = vrsqrt.pop %v1465
        %v1468 = vrsqrt.pop %v1466
        %v1469 = vmul.f32 %v1453, %v1467
        %v1470 = vmul.f32 %v1454, %v1468
        %v1471 = vlaneseq
        %v1472 = vshrl.u32 %v1471, 7
        %v1473 = vsub.s32 0, %v1472
        %v1474 = vrot.slane %v1107, %v1473
        %v1475 = vmul.f32 %v1469, %v1474
        %v1476 = vmul.f32 %v1470, %v1474
        %v1477 = vlaneseq
        %v1478 = vshrl.u32 %v1477, 7
        %v1479 = vsub.s32 0, %v1478
        %v1480 = vrot.slane %v1108, %v1479
        %v1481 = vadd.f32 %v1475, %v1480
        %v1482 = vadd.f32 %v1476, %v1480
        %1483 = vst.msk [vmem:[%s365] sm:$0xff] %vm405, %v1481
        %1484 = vst.msk [vmem:[%s365 + $0x8] sm:$0xff] %vm405, %v1482
        %s1485 = sand.u32 %s221, 1
        %s1486 = scalar_lea.sflag [#allocation7], %s1485
        %s1487 = sand.u32 %s221, 1
        %s1488 = smul.addr %s1487, 16
        %s1489 = scalar_lea.vmem [#allocation11], %s1488
        // Predicated region
        $region72: #{tpu_custom_call.1} parent=51 // pred_check
          %p1490 = pneg %p231
        $region73: #{tpu_custom_call.1} parent=51 // pred_check_branch
          %1492 = sbr.rel (%p1490) target = $region75
        $region74: #{tpu_custom_call.1} parent=51 // pred_region
          %s1493 = smul.u32 2, %s29
          %s1495 = ssub.s32 256, 256
          %1496 = vsyncadd %s1486, %s1495
          %s1497 = smul.addr %s28, 4
          %s1498 = sadd.s32 %s1493, %s1497
          %s1499 = smul.addr %s1498, 128
          %s1500 = scalar_lea.hbm %s8, %s1499
          %s1501 = sshll.u32 %s1489, 4
          %s1502 = int_to_ptr.vmem [resolvable:$true] %s1501
          %1507 = dma.vmem_to_hbm [thread:$0]  %s1502, 256, %s1500, %s1486, 128, 128, 8
        $region75: #{tpu_custom_call.1} parent=51 // pred_fallthru
          _
      $region52: #{tpu_custom_call.1} parent=5 // pred_fallthru
        _
      %p1508 = scmp.le.s32.totalorder 2, %s19
      // Predicated region
      $region76: #{tpu_custom_call.1} parent=5 // pred_check
        %p1509 = pneg %p1508
      $region77: #{tpu_custom_call.1} parent=5 // pred_check_branch
        %1511 = sbr.rel (%p1509) target = $region79
      $region78: #{tpu_custom_call.1} parent=5 // pred_region
        %s1512 = ssub.s32 %s19, 2
        // Predicated region
        $region80: #{tpu_custom_call.1} parent=78 // pred_check
          %p1513 = pneg %p237
        $region81: #{tpu_custom_call.1} parent=78 // pred_check_branch
          %1515 = sbr.rel (%p1513) target = $region83
        $region82: #{tpu_custom_call.1} parent=78 // pred_region
          %s1516 = sand.u32 %s222, 1
          %s1517 = scalar_lea.sflag [#allocation7], %s1516
          %s1518 = sand.u32 %s222, 1
          %s1519 = smul.addr %s1518, 16
          %s1520 = scalar_lea.vmem [#allocation11], %s1519
          %1521 = dma.done %s1517, 256
        $region83: #{tpu_custom_call.1} parent=78 // pred_fallthru
          _
      $region79: #{tpu_custom_call.1} parent=5 // pred_fallthru
        _
    $region6: #{tpu_custom_call.1} parent=1 // loop_footer
      %s23 = sadd.s32 1, %s19
    $region7: #{tpu_custom_call.1} parent=1 // loop_footer_branch
      %18 = sbr.rel target = $region3
    $region8: #{tpu_custom_call.1} parent=1 // loop_exit
      _
    %1522 = vsyncpa [#allocation6], 1
    %s1523 = scalar_lea.sflag [#allocation6], 1
    %1524 = vsyncpa %s1523, 1
    %1525 = vsyncpa [#allocation9], 1
    %1526 = vsyncpa [#allocation7], 1
    %s1527 = scalar_lea.sflag [#allocation7], 1
    %1528 = vsyncpa %s1527, 1

</llo_original>
